<compile_context>
chip_gen: v7x
topology: tpu7x:2x2x1
jax: 0.10.0
libtpu: 0.0.40
codegen_flags: <defaults>
</compile_context>

<pallas_src>
import functools

import numpy as np
import jax
import jax.numpy as jnp
from jax import lax
from jax.experimental import pallas as pl
from jax.experimental.pallas import tpu as pltpu


def _round_up(x, m):
    return (x + m - 1) // m * m


# ------------------------------ Pallas kernel --------------------------------

def srm_attention_kernel(p_ref, w1_ref, b1_ref, w2_ref, b2_ref, wm_ref,
                         valid_ref, o_ref, *, W1, L):
    """Fused conv1 -> conv2 -> mean/max pool -> 7x7 attn -> sigmoid for ONE
    image whose flattened (H1*W1) conv1 spatial grid sits on the lane axis.

    p_ref    : (1, K1r, L) bf16  transposed conv1 im2col patches (lanes >= H1*W1 zero)
    w1_ref   : (32, K1r)   bf16  conv1 weights, BN scale folded in
    b1_ref   : (32, 1)     f32   folded BN bias for conv1
    w2_ref   : (64, 288)   f32   conv2 weights in (di, dj, cin) order, BN scale folded
    b2_ref   : (64, 1)     f32   folded BN bias for conv2
    wm_ref   : (49, 2, L)  f32   per-tap [w_mean; w_max] * column-validity mask
    valid_ref: (1, L)      f32   1 on lanes r = i*W1+j with i < H2, j < W2, else 0
    o_ref    : (1, 1, L)   f32   sigmoid attention map on the same lane grid

    Invariants (asserted by the wrapper): L >= H1*W1 + 3*W1 + 3 and every lane
    >= H1*W1 of the pooled map is zeroed by valid_ref, so any 7x7 tap that
    rolls past a row end / the block end reads exact zeros.
    """
    # conv1 (bf16 operands, f32 accumulation) + folded BN + ReLU -> (32, L).
    f1 = jnp.dot(w1_ref[...], p_ref[0], preferred_element_type=jnp.float32)
    f1 = jnp.maximum(f1 + b1_ref[...], 0.0)

    # conv2: tap (di, dj) reads lane r + di*W1 + dj; for valid output lanes
    # (i < H2, j < W2) those reads never cross a row or the block end, so the
    # 9 taps are plain lane rolls stacked on the contraction axis, followed by
    # a single (64, 288) x (288, L) matmul.
    taps = []
    for di in range(3):
        for dj in range(3):
            off = di * W1 + dj
            taps.append(f1 if off == 0 else pltpu.roll(f1, (-off) % L, axis=1))
    stacked = jnp.concatenate(taps, axis=0)                        # (288, L)
    f2 = jnp.dot(w2_ref[...], stacked, preferred_element_type=jnp.float32)
    f2 = jnp.maximum(f2 + b2_ref[...], 0.0)                        # (64, L)

    # Channel mean / max, stacked on sublanes; zero every invalid lane so the
    # 7x7 taps that roll past a row/image boundary read exact zeros.
    inv_c = 1.0 / float(f2.shape[0])
    mean = jnp.sum(f2, axis=0, keepdims=True) * inv_c              # (1, L)
    mx = jnp.max(f2, axis=0, keepdims=True)                        # (1, L)
    pooled = jnp.concatenate([mean, mx], axis=0) * valid_ref[...]  # (2, L)

    # 7x7 spatial attention conv: one roll + mul + add per tap, 7 independent
    # accumulator chains (one per kw column) + tree sum -> no 49-deep serial
    # VPU dependency.  Column validity is pre-multiplied into wm_ref.
    partials = []
    for dj in range(7):
        acc = None
        for di in range(7):
            off = (di - 3) * W1 + (dj - 3)
            tap = pooled if off == 0 else pltpu.roll(pooled, (-off) % L, axis=1)
            term = wm_ref[di * 7 + dj] * tap                       # (2, L)
            acc = term if acc is None else acc + term
        partials.append(acc)
    while len(partials) > 1:
        nxt = [partials[i] + partials[i + 1]
               for i in range(0, len(partials) - 1, 2)]
        if len(partials) % 2:
            nxt.append(partials[-1])
        partials = nxt
    att = partials[0]                                              # (2, L)
    o_ref[0] = jax.nn.sigmoid(att[0:1, :] + att[1:2, :])           # (1, L)


# ---------------------------------- helpers ----------------------------------

def im2col_nhwc(x, kh, kw, stride, padding):
    """(B,H,W,C) -> ((B,Ho,Wo,kh*kw*C), (Ho,Wo)); feature order (kh, kw, C)."""
    B, H, W, C = x.shape
    if padding > 0:
        x = jnp.pad(x, ((0, 0), (padding, padding), (padding, padding), (0, 0)))
        H += 2 * padding
        W += 2 * padding
    Ho = (H - kh) // stride + 1
    Wo = (W - kw) // stride + 1
    cols = []
    for i in range(kh):
        for j in range(kw):
            cols.append(x[:, i:i + stride * (Ho - 1) + 1:stride,
                          j:j + stride * (Wo - 1) + 1:stride, :])
    return jnp.concatenate(cols, axis=-1), (Ho, Wo)


def _make_col_mask(W1, W2, L):
    """np (7, L): row dj is 1 where column (r % W1) + dj - 3 is inside [0, W2)."""
    cm = np.zeros((7, L), np.float32)
    for dj in range(7):
        for r in range(L):
            if 0 <= (r % W1) + dj - 3 < W2:
                cm[dj, r] = 1.0
    return cm


def _make_valid_mask(H1, W1, H2, W2, L):
    """np (1, L): 1 on lanes r = i*W1 + j with i < H2 and j < W2, else 0."""
    vm = np.zeros((1, L), np.float32)
    for r in range(H1 * W1):
        if (r // W1) < H2 and (r % W1) < W2:
            vm[0, r] = 1.0
    return vm


def init_params(key, in_channels):
    k1, k2, k3 = jax.random.split(key, 3)

    def kaiming_normal(k, shape):  # kaiming_normal_(a=1) -> std = sqrt(1/fan_in)
        fan_in = shape[1] * shape[2] * shape[3]
        return jax.random.normal(k, shape, jnp.float32) * np.sqrt(1.0 / fan_in)

    eps = 1e-5
    return dict(
        w1=kaiming_normal(k1, (32, in_channels, 3, 3)),
        s1=jnp.full((1, 32), 1.0 / np.sqrt(1.0 + eps), jnp.float32),
        b1=jnp.zeros((1, 32), jnp.float32),
        w2=kaiming_normal(k2, (64, 32, 3, 3)),
        s2=jnp.full((1, 64), 1.0 / np.sqrt(1.0 + eps), jnp.float32),
        b2=jnp.zeros((1, 64), jnp.float32),
        wsa=kaiming_normal(k3, (1, 2, 7, 7)),
    )


# ------------------------------- forward passes -------------------------------

def srm_pixel_attention_forward(x_nchw, params):
    x = jnp.transpose(x_nchw, (0, 2, 3, 1)).astype(jnp.float32)   # NHWC
    B = x.shape[0]

    # conv1 im2col (3x3, stride 2, no padding); feature order (kh, kw, cin).
    p1, (H1, W1) = im2col_nhwc(x, 3, 3, 2, 0)                     # (B, H1, W1, K1)
    H2, W2 = H1 - 2, W1 - 2
    assert H2 >= 1 and W2 >= 1
    R1 = H1 * W1
    K1 = p1.shape[-1]
    K1r = _round_up(K1, 16)                 # bf16 sublane pack, NOT padded to 128
    # Lane grid: one image's flattened (H1*W1) conv1 map per L lanes.  The zero
    # tail (lanes >= R1) must absorb every 7x7 tap that rolls past the end.
    L = _round_up(R1 + 3 * W1 + 3, 128)
    assert L >= R1 + 3 * W1 + 3

    p1 = jnp.pad(p1.reshape(B, R1, K1), ((0, 0), (0, 0), (0, K1r - K1)))
    p1t = jnp.pad(jnp.swapaxes(p1, 1, 2), ((0, 0), (0, 0), (0, L - R1)))
    p1t = p1t.astype(jnp.bfloat16)                                # (B, K1r, L)

    # Conv weights with the eval-mode BN scale folded in.  conv1 in bf16 (its
    # patches are the only per-step HBM traffic); conv2 stays f32 (VMEM-resident
    # after fusion) to keep error well inside the f32 reference tolerance.
    w1m = jnp.transpose(params["w1"], (0, 2, 3, 1)).reshape(32, K1)
    w1m = jnp.pad(w1m * params["s1"].reshape(-1, 1), ((0, 0), (0, K1r - K1)))
    w1m = w1m.astype(jnp.bfloat16)                                # (32, K1r)
    b1c = params["b1"].reshape(-1, 1).astype(jnp.float32)         # (32, 1)
    w2m = (jnp.transpose(params["w2"], (0, 2, 3, 1)).reshape(64, 9 * 32)
           * params["s2"].reshape(-1, 1)).astype(jnp.float32)     # (64, 288)
    b2c = params["b2"].reshape(-1, 1).astype(jnp.float32)         # (64, 1)

    # Per-tap 7x7 attention weights times column-validity mask: (49, 2, L).
    colmask = _make_col_mask(W1, W2, L)                           # np (7, L)
    cm49 = jnp.asarray(colmask[np.arange(49) % 7])                # (49, L), row dj
    w_t = jnp.transpose(params["wsa"][0], (1, 2, 0)).reshape(49, 2, 1)
    wmask = (w_t * cm49[:, None, :]).astype(jnp.float32)          # (49, 2, L)

    valid = jnp.asarray(_make_valid_mask(H1, W1, H2, W2, L))      # (1, L)

    kernel = functools.partial(srm_attention_kernel, W1=W1, L=L)
    out = pl.pallas_call(
        kernel,
        out_shape=jax.ShapeDtypeStruct((B, 1, L), jnp.float32),
        grid=(B,),
        in_specs=[
            pl.BlockSpec((1, K1r, L), lambda b: (b, 0, 0)),
            pl.BlockSpec((32, K1r), lambda b: (0, 0)),
            pl.BlockSpec((32, 1), lambda b: (0, 0)),
            pl.BlockSpec((64, 9 * 32), lambda b: (0, 0)),
            pl.BlockSpec((64, 1), lambda b: (0, 0)),
            pl.BlockSpec((49, 2, L), lambda b: (0, 0, 0)),
            pl.BlockSpec((1, L), lambda b: (0, 0)),
        ],
        out_specs=pl.BlockSpec((1, 1, L), lambda b: (b, 0, 0)),
        compiler_params=pltpu.CompilerParams(
            dimension_semantics=("parallel",)),
    )(p1t, w1m, b1c, w2m, b2c, wmask, valid)

    att = out[:, 0, :H2 * W1].reshape(B, H2, W1)[:, :, :W2]       # (B, H2, W2)
    return att[:, None, :, :]                                     # (B, 1, H2, W2)


def reference_forward(x_nchw, params):
    dn = ("NCHW", "OIHW", "NCHW")
    hp = lax.Precision.HIGHEST
    f = lax.conv_general_dilated(x_nchw, params["w1"], (2, 2), [(0, 0), (0, 0)],
                                 dimension_numbers=dn, precision=hp)
    f = jnp.maximum(f * params["s1"].reshape(1, -1, 1, 1)
                    + params["b1"].reshape(1, -1, 1, 1), 0.0)
    f = lax.conv_general_dilated(f, params["w2"], (1, 1), [(0, 0), (0, 0)],
                                 dimension_numbers=dn, precision=hp)
    f = jnp.maximum(f * params["s2"].reshape(1, -1, 1, 1)
                    + params["b2"].reshape(1, -1, 1, 1), 0.0)
    avg = jnp.mean(f, axis=1, keepdims=True)
    mx = jnp.max(f, axis=1, keepdims=True)
    cat = jnp.concatenate([avg, mx], axis=1)
    att = lax.conv_general_dilated(cat, params["wsa"], (1, 1), [(3, 3), (3, 3)],
                                   dimension_numbers=dn, precision=hp)
    return jax.nn.sigmoid(att)


# ------------------------------------ main ------------------------------------

if __name__ == "__main__":
    key = jax.random.PRNGKey(0)
    k_x, k_p = jax.random.split(key)

    B, C_in, H, W = 2, 4, 16, 16
    x = jax.random.normal(k_x, (B, C_in, H, W), jnp.float32)
    params = init_params(k_p, C_in)

    out = jax.block_until_ready(srm_pixel_attention_forward(x, params))
    ref = jax.block_until_ready(reference_forward(x, params))

    assert out.shape == (B, 1, 5, 5), out.shape
    np.testing.assert_allclose(np.asarray(out), np.asarray(ref),
                               rtol=1e-3, atol=5e-3)
    print("KERNEL_OK")
</pallas_src>

<mosaic_0001>
module attributes {stable_mosaic.version = 11 : i64} {
  func.func @srm_attention_kernel(%arg0: i32, %arg1: memref<1x48x128xbf16, #tpu.memory_space<vmem>>, %arg2: memref<32x48xbf16, #tpu.memory_space<vmem>>, %arg3: memref<32x1xf32, #tpu.memory_space<vmem>>, %arg4: memref<64x288xf32, #tpu.memory_space<vmem>>, %arg5: memref<64x1xf32, #tpu.memory_space<vmem>>, %arg6: memref<49x2x128xf32, #tpu.memory_space<vmem>>, %arg7: memref<1x128xf32, #tpu.memory_space<vmem>>, %arg8: memref<1x1x128xf32, #tpu.memory_space<vmem>>) attributes {dimension_semantics = [#tpu.dimension_semantics<parallel>], iteration_bounds = array<i64: 2>, scalar_prefetch = 0 : i64, scratch_operands = 0 : i64, tpu.core_type = #tpu.core_type<tc>, window_params = [{transform_indices = @transform_0, window_bounds = array<i64: 1, 48, 128>}, {pipeline_mode = #tpu.pipeline_mode<synchronous>, transform_indices = @transform_1, window_bounds = array<i64: 32, 48>}, {pipeline_mode = #tpu.pipeline_mode<synchronous>, transform_indices = @transform_2, window_bounds = array<i64: 32, 1>}, {pipeline_mode = #tpu.pipeline_mode<synchronous>, transform_indices = @transform_3, window_bounds = array<i64: 64, 288>}, {pipeline_mode = #tpu.pipeline_mode<synchronous>, transform_indices = @transform_4, window_bounds = array<i64: 64, 1>}, {pipeline_mode = #tpu.pipeline_mode<synchronous>, transform_indices = @transform_5, window_bounds = array<i64: 49, 2, 128>}, {pipeline_mode = #tpu.pipeline_mode<synchronous>, transform_indices = @transform_6, window_bounds = array<i64: 1, 128>}, {transform_indices = @transform_7, window_bounds = array<i64: 1, 1, 128>}]} {
    %c0 = arith.constant 0 : index
    %c0_0 = arith.constant 0 : index
    %0 = vector.load %arg2[%c0, %c0_0] : memref<32x48xbf16, #tpu.memory_space<vmem>>, vector<32x48xbf16>
    %c0_1 = arith.constant 0 : index
    %c0_2 = arith.constant 0 : index
    %c0_3 = arith.constant 0 : index
    %1 = vector.load %arg1[%c0_1, %c0_2, %c0_3] : memref<1x48x128xbf16, #tpu.memory_space<vmem>>, vector<1x48x128xbf16>
    %2 = vector.shape_cast %1 : vector<1x48x128xbf16> to vector<48x128xbf16>
    %cst = arith.constant dense<0.000000e+00> : vector<32x128xf32>
    %3 = tpu.matmul %0, %2, %cst {dimension_numbers = #tpu.dot_dimension_numbers<[1], [0], [0], [1], [0, 0, 1, 1], [], []>} : vector<32x48xbf16>, vector<48x128xbf16>, vector<32x128xf32> -> vector<32x128xf32>
    %c0_4 = arith.constant 0 : index
    %c0_5 = arith.constant 0 : index
    %4 = vector.load %arg3[%c0_4, %c0_5] : memref<32x1xf32, #tpu.memory_space<vmem>>, vector<32x1xf32>
    %5 = vector.broadcast %4 : vector<32x1xf32> to vector<32x128xf32>
    %6 = arith.addf %3, %5 : vector<32x128xf32>
    %cst_6 = arith.constant 0.000000e+00 : f32
    %7 = vector.broadcast %cst_6 : f32 to vector<32x128xf32>
    %8 = arith.maximumf %6, %7 : vector<32x128xf32>
    %c127_i32 = arith.constant 127 : i32
    %9 = tpu.dynamic_rotate %8 by %c127_i32 dim 1 : vector<32x128xf32>, i32 -> vector<32x128xf32>
    %c126_i32 = arith.constant 126 : i32
    %10 = tpu.dynamic_rotate %8 by %c126_i32 dim 1 : vector<32x128xf32>, i32 -> vector<32x128xf32>
    %c121_i32 = arith.constant 121 : i32
    %11 = tpu.dynamic_rotate %8 by %c121_i32 dim 1 : vector<32x128xf32>, i32 -> vector<32x128xf32>
    %c120_i32 = arith.constant 120 : i32
    %12 = tpu.dynamic_rotate %8 by %c120_i32 dim 1 : vector<32x128xf32>, i32 -> vector<32x128xf32>
    %c119_i32 = arith.constant 119 : i32
    %13 = tpu.dynamic_rotate %8 by %c119_i32 dim 1 : vector<32x128xf32>, i32 -> vector<32x128xf32>
    %c114_i32 = arith.constant 114 : i32
    %14 = tpu.dynamic_rotate %8 by %c114_i32 dim 1 : vector<32x128xf32>, i32 -> vector<32x128xf32>
    %c113_i32 = arith.constant 113 : i32
    %15 = tpu.dynamic_rotate %8 by %c113_i32 dim 1 : vector<32x128xf32>, i32 -> vector<32x128xf32>
    %c112_i32 = arith.constant 112 : i32
    %16 = tpu.dynamic_rotate %8 by %c112_i32 dim 1 : vector<32x128xf32>, i32 -> vector<32x128xf32>
    %17 = tpu.concatenate %8, %9, %10, %11, %12, %13, %14, %15, %16 in 0 : vector<32x128xf32>, vector<32x128xf32>, vector<32x128xf32>, vector<32x128xf32>, vector<32x128xf32>, vector<32x128xf32>, vector<32x128xf32>, vector<32x128xf32>, vector<32x128xf32> -> vector<288x128xf32>
    %c0_7 = arith.constant 0 : index
    %c0_8 = arith.constant 0 : index
    %18 = vector.load %arg4[%c0_7, %c0_8] : memref<64x288xf32, #tpu.memory_space<vmem>>, vector<64x288xf32>
    %cst_9 = arith.constant dense<0.000000e+00> : vector<64x128xf32>
    %19 = tpu.matmul %18, %17, %cst_9 {dimension_numbers = #tpu.dot_dimension_numbers<[1], [0], [0], [1], [0, 0, 1, 1], [], []>} : vector<64x288xf32>, vector<288x128xf32>, vector<64x128xf32> -> vector<64x128xf32>
    %c0_10 = arith.constant 0 : index
    %c0_11 = arith.constant 0 : index
    %20 = vector.load %arg5[%c0_10, %c0_11] : memref<64x1xf32, #tpu.memory_space<vmem>>, vector<64x1xf32>
    %21 = vector.broadcast %20 : vector<64x1xf32> to vector<64x128xf32>
    %22 = arith.addf %19, %21 : vector<64x128xf32>
    %cst_12 = arith.constant 0.000000e+00 : f32
    %23 = vector.broadcast %cst_12 : f32 to vector<64x128xf32>
    %24 = arith.maximumf %22, %23 : vector<64x128xf32>
    %cst_13 = arith.constant dense<0.000000e+00> : vector<128xf32>
    %25 = vector.multi_reduction <add>, %24, %cst_13 [0] : vector<64x128xf32> to vector<128xf32>
    %26 = vector.shape_cast %25 : vector<128xf32> to vector<1x128xf32>
    %cst_14 = arith.constant 1.562500e-02 : f32
    %27 = vector.broadcast %cst_14 : f32 to vector<1x128xf32>
    %28 = arith.mulf %26, %27 : vector<1x128xf32>
    %cst_15 = arith.constant dense<0xFF800000> : vector<128xf32>
    %29 = vector.multi_reduction <maximumf>, %24, %cst_15 [0] : vector<64x128xf32> to vector<128xf32>
    %30 = vector.shape_cast %29 : vector<128xf32> to vector<1x128xf32>
    %31 = tpu.concatenate %28, %30 in 0 : vector<1x128xf32>, vector<1x128xf32> -> vector<2x128xf32>
    %c0_16 = arith.constant 0 : index
    %c0_17 = arith.constant 0 : index
    %32 = vector.load %arg7[%c0_16, %c0_17] : memref<1x128xf32, #tpu.memory_space<vmem>>, vector<1x128xf32>
    %33 = vector.broadcast %32 : vector<1x128xf32> to vector<2x128xf32>
    %34 = arith.mulf %31, %33 : vector<2x128xf32>
    %c24_i32 = arith.constant 24 : i32
    %35 = tpu.dynamic_rotate %34 by %c24_i32 dim 1 : vector<2x128xf32>, i32 -> vector<2x128xf32>
    %c0_18 = arith.constant 0 : index
    %c0_19 = arith.constant 0 : index
    %c0_20 = arith.constant 0 : index
    %36 = vector.load %arg6[%c0_18, %c0_19, %c0_20] : memref<49x2x128xf32, #tpu.memory_space<vmem>>, vector<1x2x128xf32>
    %37 = vector.shape_cast %36 : vector<1x2x128xf32> to vector<2x128xf32>
    %38 = arith.mulf %37, %35 : vector<2x128xf32>
    %c17_i32 = arith.constant 17 : i32
    %39 = tpu.dynamic_rotate %34 by %c17_i32 dim 1 : vector<2x128xf32>, i32 -> vector<2x128xf32>
    %c7 = arith.constant 7 : index
    %c0_21 = arith.constant 0 : index
    %c0_22 = arith.constant 0 : index
    %40 = vector.load %arg6[%c7, %c0_21, %c0_22] : memref<49x2x128xf32, #tpu.memory_space<vmem>>, vector<1x2x128xf32>
    %41 = vector.shape_cast %40 : vector<1x2x128xf32> to vector<2x128xf32>
    %42 = arith.mulf %41, %39 : vector<2x128xf32>
    %43 = arith.addf %38, %42 : vector<2x128xf32>
    %c10_i32 = arith.constant 10 : i32
    %44 = tpu.dynamic_rotate %34 by %c10_i32 dim 1 : vector<2x128xf32>, i32 -> vector<2x128xf32>
    %c14 = arith.constant 14 : index
    %c0_23 = arith.constant 0 : index
    %c0_24 = arith.constant 0 : index
    %45 = vector.load %arg6[%c14, %c0_23, %c0_24] : memref<49x2x128xf32, #tpu.memory_space<vmem>>, vector<1x2x128xf32>
    %46 = vector.shape_cast %45 : vector<1x2x128xf32> to vector<2x128xf32>
    %47 = arith.mulf %46, %44 : vector<2x128xf32>
    %48 = arith.addf %43, %47 : vector<2x128xf32>
    %c3_i32 = arith.constant 3 : i32
    %49 = tpu.dynamic_rotate %34 by %c3_i32 dim 1 : vector<2x128xf32>, i32 -> vector<2x128xf32>
    %c21 = arith.constant 21 : index
    %c0_25 = arith.constant 0 : index
    %c0_26 = arith.constant 0 : index
    %50 = vector.load %arg6[%c21, %c0_25, %c0_26] : memref<49x2x128xf32, #tpu.memory_space<vmem>>, vector<1x2x128xf32>
    %51 = vector.shape_cast %50 : vector<1x2x128xf32> to vector<2x128xf32>
    %52 = arith.mulf %51, %49 : vector<2x128xf32>
    %53 = arith.addf %48, %52 : vector<2x128xf32>
    %c124_i32 = arith.constant 124 : i32
    %54 = tpu.dynamic_rotate %34 by %c124_i32 dim 1 : vector<2x128xf32>, i32 -> vector<2x128xf32>
    %c28 = arith.constant 28 : index
    %c0_27 = arith.constant 0 : index
    %c0_28 = arith.constant 0 : index
    %55 = vector.load %arg6[%c28, %c0_27, %c0_28] : memref<49x2x128xf32, #tpu.memory_space<vmem>>, vector<1x2x128xf32>
    %56 = vector.shape_cast %55 : vector<1x2x128xf32> to vector<2x128xf32>
    %57 = arith.mulf %56, %54 : vector<2x128xf32>
    %58 = arith.addf %53, %57 : vector<2x128xf32>
    %c117_i32 = arith.constant 117 : i32
    %59 = tpu.dynamic_rotate %34 by %c117_i32 dim 1 : vector<2x128xf32>, i32 -> vector<2x128xf32>
    %c35 = arith.constant 35 : index
    %c0_29 = arith.constant 0 : index
    %c0_30 = arith.constant 0 : index
    %60 = vector.load %arg6[%c35, %c0_29, %c0_30] : memref<49x2x128xf32, #tpu.memory_space<vmem>>, vector<1x2x128xf32>
    %61 = vector.shape_cast %60 : vector<1x2x128xf32> to vector<2x128xf32>
    %62 = arith.mulf %61, %59 : vector<2x128xf32>
    %63 = arith.addf %58, %62 : vector<2x128xf32>
    %c110_i32 = arith.constant 110 : i32
    %64 = tpu.dynamic_rotate %34 by %c110_i32 dim 1 : vector<2x128xf32>, i32 -> vector<2x128xf32>
    %c42 = arith.constant 42 : index
    %c0_31 = arith.constant 0 : index
    %c0_32 = arith.constant 0 : index
    %65 = vector.load %arg6[%c42, %c0_31, %c0_32] : memref<49x2x128xf32, #tpu.memory_space<vmem>>, vector<1x2x128xf32>
    %66 = vector.shape_cast %65 : vector<1x2x128xf32> to vector<2x128xf32>
    %67 = arith.mulf %66, %64 : vector<2x128xf32>
    %68 = arith.addf %63, %67 : vector<2x128xf32>
    %c23_i32 = arith.constant 23 : i32
    %69 = tpu.dynamic_rotate %34 by %c23_i32 dim 1 : vector<2x128xf32>, i32 -> vector<2x128xf32>
    %c1 = arith.constant 1 : index
    %c0_33 = arith.constant 0 : index
    %c0_34 = arith.constant 0 : index
    %70 = vector.load %arg6[%c1, %c0_33, %c0_34] : memref<49x2x128xf32, #tpu.memory_space<vmem>>, vector<1x2x128xf32>
    %71 = vector.shape_cast %70 : vector<1x2x128xf32> to vector<2x128xf32>
    %72 = arith.mulf %71, %69 : vector<2x128xf32>
    %c16_i32 = arith.constant 16 : i32
    %73 = tpu.dynamic_rotate %34 by %c16_i32 dim 1 : vector<2x128xf32>, i32 -> vector<2x128xf32>
    %c8 = arith.constant 8 : index
    %c0_35 = arith.constant 0 : index
    %c0_36 = arith.constant 0 : index
    %74 = vector.load %arg6[%c8, %c0_35, %c0_36] : memref<49x2x128xf32, #tpu.memory_space<vmem>>, vector<1x2x128xf32>
    %75 = vector.shape_cast %74 : vector<1x2x128xf32> to vector<2x128xf32>
    %76 = arith.mulf %75, %73 : vector<2x128xf32>
    %77 = arith.addf %72, %76 : vector<2x128xf32>
    %c9_i32 = arith.constant 9 : i32
    %78 = tpu.dynamic_rotate %34 by %c9_i32 dim 1 : vector<2x128xf32>, i32 -> vector<2x128xf32>
    %c15 = arith.constant 15 : index
    %c0_37 = arith.constant 0 : index
    %c0_38 = arith.constant 0 : index
    %79 = vector.load %arg6[%c15, %c0_37, %c0_38] : memref<49x2x128xf32, #tpu.memory_space<vmem>>, vector<1x2x128xf32>
    %80 = vector.shape_cast %79 : vector<1x2x128xf32> to vector<2x128xf32>
    %81 = arith.mulf %80, %78 : vector<2x128xf32>
    %82 = arith.addf %77, %81 : vector<2x128xf32>
    %c2_i32 = arith.constant 2 : i32
    %83 = tpu.dynamic_rotate %34 by %c2_i32 dim 1 : vector<2x128xf32>, i32 -> vector<2x128xf32>
    %c22 = arith.constant 22 : index
    %c0_39 = arith.constant 0 : index
    %c0_40 = arith.constant 0 : index
    %84 = vector.load %arg6[%c22, %c0_39, %c0_40] : memref<49x2x128xf32, #tpu.memory_space<vmem>>, vector<1x2x128xf32>
    %85 = vector.shape_cast %84 : vector<1x2x128xf32> to vector<2x128xf32>
    %86 = arith.mulf %85, %83 : vector<2x128xf32>
    %87 = arith.addf %82, %86 : vector<2x128xf32>
    %c123_i32 = arith.constant 123 : i32
    %88 = tpu.dynamic_rotate %34 by %c123_i32 dim 1 : vector<2x128xf32>, i32 -> vector<2x128xf32>
    %c29 = arith.constant 29 : index
    %c0_41 = arith.constant 0 : index
    %c0_42 = arith.constant 0 : index
    %89 = vector.load %arg6[%c29, %c0_41, %c0_42] : memref<49x2x128xf32, #tpu.memory_space<vmem>>, vector<1x2x128xf32>
    %90 = vector.shape_cast %89 : vector<1x2x128xf32> to vector<2x128xf32>
    %91 = arith.mulf %90, %88 : vector<2x128xf32>
    %92 = arith.addf %87, %91 : vector<2x128xf32>
    %c116_i32 = arith.constant 116 : i32
    %93 = tpu.dynamic_rotate %34 by %c116_i32 dim 1 : vector<2x128xf32>, i32 -> vector<2x128xf32>
    %c36 = arith.constant 36 : index
    %c0_43 = arith.constant 0 : index
    %c0_44 = arith.constant 0 : index
    %94 = vector.load %arg6[%c36, %c0_43, %c0_44] : memref<49x2x128xf32, #tpu.memory_space<vmem>>, vector<1x2x128xf32>
    %95 = vector.shape_cast %94 : vector<1x2x128xf32> to vector<2x128xf32>
    %96 = arith.mulf %95, %93 : vector<2x128xf32>
    %97 = arith.addf %92, %96 : vector<2x128xf32>
    %c109_i32 = arith.constant 109 : i32
    %98 = tpu.dynamic_rotate %34 by %c109_i32 dim 1 : vector<2x128xf32>, i32 -> vector<2x128xf32>
    %c43 = arith.constant 43 : index
    %c0_45 = arith.constant 0 : index
    %c0_46 = arith.constant 0 : index
    %99 = vector.load %arg6[%c43, %c0_45, %c0_46] : memref<49x2x128xf32, #tpu.memory_space<vmem>>, vector<1x2x128xf32>
    %100 = vector.shape_cast %99 : vector<1x2x128xf32> to vector<2x128xf32>
    %101 = arith.mulf %100, %98 : vector<2x128xf32>
    %102 = arith.addf %97, %101 : vector<2x128xf32>
    %c22_i32 = arith.constant 22 : i32
    %103 = tpu.dynamic_rotate %34 by %c22_i32 dim 1 : vector<2x128xf32>, i32 -> vector<2x128xf32>
    %c2 = arith.constant 2 : index
    %c0_47 = arith.constant 0 : index
    %c0_48 = arith.constant 0 : index
    %104 = vector.load %arg6[%c2, %c0_47, %c0_48] : memref<49x2x128xf32, #tpu.memory_space<vmem>>, vector<1x2x128xf32>
    %105 = vector.shape_cast %104 : vector<1x2x128xf32> to vector<2x128xf32>
    %106 = arith.mulf %105, %103 : vector<2x128xf32>
    %c15_i32 = arith.constant 15 : i32
    %107 = tpu.dynamic_rotate %34 by %c15_i32 dim 1 : vector<2x128xf32>, i32 -> vector<2x128xf32>
    %c9 = arith.constant 9 : index
    %c0_49 = arith.constant 0 : index
    %c0_50 = arith.constant 0 : index
    %108 = vector.load %arg6[%c9, %c0_49, %c0_50] : memref<49x2x128xf32, #tpu.memory_space<vmem>>, vector<1x2x128xf32>
    %109 = vector.shape_cast %108 : vector<1x2x128xf32> to vector<2x128xf32>
    %110 = arith.mulf %109, %107 : vector<2x128xf32>
    %111 = arith.addf %106, %110 : vector<2x128xf32>
    %c8_i32 = arith.constant 8 : i32
    %112 = tpu.dynamic_rotate %34 by %c8_i32 dim 1 : vector<2x128xf32>, i32 -> vector<2x128xf32>
    %c16 = arith.constant 16 : index
    %c0_51 = arith.constant 0 : index
    %c0_52 = arith.constant 0 : index
    %113 = vector.load %arg6[%c16, %c0_51, %c0_52] : memref<49x2x128xf32, #tpu.memory_space<vmem>>, vector<1x2x128xf32>
    %114 = vector.shape_cast %113 : vector<1x2x128xf32> to vector<2x128xf32>
    %115 = arith.mulf %114, %112 : vector<2x128xf32>
    %116 = arith.addf %111, %115 : vector<2x128xf32>
    %c1_i32 = arith.constant 1 : i32
    %117 = tpu.dynamic_rotate %34 by %c1_i32 dim 1 : vector<2x128xf32>, i32 -> vector<2x128xf32>
    %c23 = arith.constant 23 : index
    %c0_53 = arith.constant 0 : index
    %c0_54 = arith.constant 0 : index
    %118 = vector.load %arg6[%c23, %c0_53, %c0_54] : memref<49x2x128xf32, #tpu.memory_space<vmem>>, vector<1x2x128xf32>
    %119 = vector.shape_cast %118 : vector<1x2x128xf32> to vector<2x128xf32>
    %120 = arith.mulf %119, %117 : vector<2x128xf32>
    %121 = arith.addf %116, %120 : vector<2x128xf32>
    %c122_i32 = arith.constant 122 : i32
    %122 = tpu.dynamic_rotate %34 by %c122_i32 dim 1 : vector<2x128xf32>, i32 -> vector<2x128xf32>
    %c30 = arith.constant 30 : index
    %c0_55 = arith.constant 0 : index
    %c0_56 = arith.constant 0 : index
    %123 = vector.load %arg6[%c30, %c0_55, %c0_56] : memref<49x2x128xf32, #tpu.memory_space<vmem>>, vector<1x2x128xf32>
    %124 = vector.shape_cast %123 : vector<1x2x128xf32> to vector<2x128xf32>
    %125 = arith.mulf %124, %122 : vector<2x128xf32>
    %126 = arith.addf %121, %125 : vector<2x128xf32>
    %c115_i32 = arith.constant 115 : i32
    %127 = tpu.dynamic_rotate %34 by %c115_i32 dim 1 : vector<2x128xf32>, i32 -> vector<2x128xf32>
    %c37 = arith.constant 37 : index
    %c0_57 = arith.constant 0 : index
    %c0_58 = arith.constant 0 : index
    %128 = vector.load %arg6[%c37, %c0_57, %c0_58] : memref<49x2x128xf32, #tpu.memory_space<vmem>>, vector<1x2x128xf32>
    %129 = vector.shape_cast %128 : vector<1x2x128xf32> to vector<2x128xf32>
    %130 = arith.mulf %129, %127 : vector<2x128xf32>
    %131 = arith.addf %126, %130 : vector<2x128xf32>
    %c108_i32 = arith.constant 108 : i32
    %132 = tpu.dynamic_rotate %34 by %c108_i32 dim 1 : vector<2x128xf32>, i32 -> vector<2x128xf32>
    %c44 = arith.constant 44 : index
    %c0_59 = arith.constant 0 : index
    %c0_60 = arith.constant 0 : index
    %133 = vector.load %arg6[%c44, %c0_59, %c0_60] : memref<49x2x128xf32, #tpu.memory_space<vmem>>, vector<1x2x128xf32>
    %134 = vector.shape_cast %133 : vector<1x2x128xf32> to vector<2x128xf32>
    %135 = arith.mulf %134, %132 : vector<2x128xf32>
    %136 = arith.addf %131, %135 : vector<2x128xf32>
    %c21_i32 = arith.constant 21 : i32
    %137 = tpu.dynamic_rotate %34 by %c21_i32 dim 1 : vector<2x128xf32>, i32 -> vector<2x128xf32>
    %c3 = arith.constant 3 : index
    %c0_61 = arith.constant 0 : index
    %c0_62 = arith.constant 0 : index
    %138 = vector.load %arg6[%c3, %c0_61, %c0_62] : memref<49x2x128xf32, #tpu.memory_space<vmem>>, vector<1x2x128xf32>
    %139 = vector.shape_cast %138 : vector<1x2x128xf32> to vector<2x128xf32>
    %140 = arith.mulf %139, %137 : vector<2x128xf32>
    %c14_i32 = arith.constant 14 : i32
    %141 = tpu.dynamic_rotate %34 by %c14_i32 dim 1 : vector<2x128xf32>, i32 -> vector<2x128xf32>
    %c10 = arith.constant 10 : index
    %c0_63 = arith.constant 0 : index
    %c0_64 = arith.constant 0 : index
    %142 = vector.load %arg6[%c10, %c0_63, %c0_64] : memref<49x2x128xf32, #tpu.memory_space<vmem>>, vector<1x2x128xf32>
    %143 = vector.shape_cast %142 : vector<1x2x128xf32> to vector<2x128xf32>
    %144 = arith.mulf %143, %141 : vector<2x128xf32>
    %145 = arith.addf %140, %144 : vector<2x128xf32>
    %c7_i32 = arith.constant 7 : i32
    %146 = tpu.dynamic_rotate %34 by %c7_i32 dim 1 : vector<2x128xf32>, i32 -> vector<2x128xf32>
    %c17 = arith.constant 17 : index
    %c0_65 = arith.constant 0 : index
    %c0_66 = arith.constant 0 : index
    %147 = vector.load %arg6[%c17, %c0_65, %c0_66] : memref<49x2x128xf32, #tpu.memory_space<vmem>>, vector<1x2x128xf32>
    %148 = vector.shape_cast %147 : vector<1x2x128xf32> to vector<2x128xf32>
    %149 = arith.mulf %148, %146 : vector<2x128xf32>
    %150 = arith.addf %145, %149 : vector<2x128xf32>
    %c24 = arith.constant 24 : index
    %c0_67 = arith.constant 0 : index
    %c0_68 = arith.constant 0 : index
    %151 = vector.load %arg6[%c24, %c0_67, %c0_68] : memref<49x2x128xf32, #tpu.memory_space<vmem>>, vector<1x2x128xf32>
    %152 = vector.shape_cast %151 : vector<1x2x128xf32> to vector<2x128xf32>
    %153 = arith.mulf %152, %34 : vector<2x128xf32>
    %154 = arith.addf %150, %153 : vector<2x128xf32>
    %c121_i32_69 = arith.constant 121 : i32
    %155 = tpu.dynamic_rotate %34 by %c121_i32_69 dim 1 : vector<2x128xf32>, i32 -> vector<2x128xf32>
    %c31 = arith.constant 31 : index
    %c0_70 = arith.constant 0 : index
    %c0_71 = arith.constant 0 : index
    %156 = vector.load %arg6[%c31, %c0_70, %c0_71] : memref<49x2x128xf32, #tpu.memory_space<vmem>>, vector<1x2x128xf32>
    %157 = vector.shape_cast %156 : vector<1x2x128xf32> to vector<2x128xf32>
    %158 = arith.mulf %157, %155 : vector<2x128xf32>
    %159 = arith.addf %154, %158 : vector<2x128xf32>
    %c114_i32_72 = arith.constant 114 : i32
    %160 = tpu.dynamic_rotate %34 by %c114_i32_72 dim 1 : vector<2x128xf32>, i32 -> vector<2x128xf32>
    %c38 = arith.constant 38 : index
    %c0_73 = arith.constant 0 : index
    %c0_74 = arith.constant 0 : index
    %161 = vector.load %arg6[%c38, %c0_73, %c0_74] : memref<49x2x128xf32, #tpu.memory_space<vmem>>, vector<1x2x128xf32>
    %162 = vector.shape_cast %161 : vector<1x2x128xf32> to vector<2x128xf32>
    %163 = arith.mulf %162, %160 : vector<2x128xf32>
    %164 = arith.addf %159, %163 : vector<2x128xf32>
    %c107_i32 = arith.constant 107 : i32
    %165 = tpu.dynamic_rotate %34 by %c107_i32 dim 1 : vector<2x128xf32>, i32 -> vector<2x128xf32>
    %c45 = arith.constant 45 : index
    %c0_75 = arith.constant 0 : index
    %c0_76 = arith.constant 0 : index
    %166 = vector.load %arg6[%c45, %c0_75, %c0_76] : memref<49x2x128xf32, #tpu.memory_space<vmem>>, vector<1x2x128xf32>
    %167 = vector.shape_cast %166 : vector<1x2x128xf32> to vector<2x128xf32>
    %168 = arith.mulf %167, %165 : vector<2x128xf32>
    %169 = arith.addf %164, %168 : vector<2x128xf32>
    %c20_i32 = arith.constant 20 : i32
    %170 = tpu.dynamic_rotate %34 by %c20_i32 dim 1 : vector<2x128xf32>, i32 -> vector<2x128xf32>
    %c4 = arith.constant 4 : index
    %c0_77 = arith.constant 0 : index
    %c0_78 = arith.constant 0 : index
    %171 = vector.load %arg6[%c4, %c0_77, %c0_78] : memref<49x2x128xf32, #tpu.memory_space<vmem>>, vector<1x2x128xf32>
    %172 = vector.shape_cast %171 : vector<1x2x128xf32> to vector<2x128xf32>
    %173 = arith.mulf %172, %170 : vector<2x128xf32>
    %c13_i32 = arith.constant 13 : i32
    %174 = tpu.dynamic_rotate %34 by %c13_i32 dim 1 : vector<2x128xf32>, i32 -> vector<2x128xf32>
    %c11 = arith.constant 11 : index
    %c0_79 = arith.constant 0 : index
    %c0_80 = arith.constant 0 : index
    %175 = vector.load %arg6[%c11, %c0_79, %c0_80] : memref<49x2x128xf32, #tpu.memory_space<vmem>>, vector<1x2x128xf32>
    %176 = vector.shape_cast %175 : vector<1x2x128xf32> to vector<2x128xf32>
    %177 = arith.mulf %176, %174 : vector<2x128xf32>
    %178 = arith.addf %173, %177 : vector<2x128xf32>
    %c6_i32 = arith.constant 6 : i32
    %179 = tpu.dynamic_rotate %34 by %c6_i32 dim 1 : vector<2x128xf32>, i32 -> vector<2x128xf32>
    %c18 = arith.constant 18 : index
    %c0_81 = arith.constant 0 : index
    %c0_82 = arith.constant 0 : index
    %180 = vector.load %arg6[%c18, %c0_81, %c0_82] : memref<49x2x128xf32, #tpu.memory_space<vmem>>, vector<1x2x128xf32>
    %181 = vector.shape_cast %180 : vector<1x2x128xf32> to vector<2x128xf32>
    %182 = arith.mulf %181, %179 : vector<2x128xf32>
    %183 = arith.addf %178, %182 : vector<2x128xf32>
    %c127_i32_83 = arith.constant 127 : i32
    %184 = tpu.dynamic_rotate %34 by %c127_i32_83 dim 1 : vector<2x128xf32>, i32 -> vector<2x128xf32>
    %c25 = arith.constant 25 : index
    %c0_84 = arith.constant 0 : index
    %c0_85 = arith.constant 0 : index
    %185 = vector.load %arg6[%c25, %c0_84, %c0_85] : memref<49x2x128xf32, #tpu.memory_space<vmem>>, vector<1x2x128xf32>
    %186 = vector.shape_cast %185 : vector<1x2x128xf32> to vector<2x128xf32>
    %187 = arith.mulf %186, %184 : vector<2x128xf32>
    %188 = arith.addf %183, %187 : vector<2x128xf32>
    %c120_i32_86 = arith.constant 120 : i32
    %189 = tpu.dynamic_rotate %34 by %c120_i32_86 dim 1 : vector<2x128xf32>, i32 -> vector<2x128xf32>
    %c32 = arith.constant 32 : index
    %c0_87 = arith.constant 0 : index
    %c0_88 = arith.constant 0 : index
    %190 = vector.load %arg6[%c32, %c0_87, %c0_88] : memref<49x2x128xf32, #tpu.memory_space<vmem>>, vector<1x2x128xf32>
    %191 = vector.shape_cast %190 : vector<1x2x128xf32> to vector<2x128xf32>
    %192 = arith.mulf %191, %189 : vector<2x128xf32>
    %193 = arith.addf %188, %192 : vector<2x128xf32>
    %c113_i32_89 = arith.constant 113 : i32
    %194 = tpu.dynamic_rotate %34 by %c113_i32_89 dim 1 : vector<2x128xf32>, i32 -> vector<2x128xf32>
    %c39 = arith.constant 39 : index
    %c0_90 = arith.constant 0 : index
    %c0_91 = arith.constant 0 : index
    %195 = vector.load %arg6[%c39, %c0_90, %c0_91] : memref<49x2x128xf32, #tpu.memory_space<vmem>>, vector<1x2x128xf32>
    %196 = vector.shape_cast %195 : vector<1x2x128xf32> to vector<2x128xf32>
    %197 = arith.mulf %196, %194 : vector<2x128xf32>
    %198 = arith.addf %193, %197 : vector<2x128xf32>
    %c106_i32 = arith.constant 106 : i32
    %199 = tpu.dynamic_rotate %34 by %c106_i32 dim 1 : vector<2x128xf32>, i32 -> vector<2x128xf32>
    %c46 = arith.constant 46 : index
    %c0_92 = arith.constant 0 : index
    %c0_93 = arith.constant 0 : index
    %200 = vector.load %arg6[%c46, %c0_92, %c0_93] : memref<49x2x128xf32, #tpu.memory_space<vmem>>, vector<1x2x128xf32>
    %201 = vector.shape_cast %200 : vector<1x2x128xf32> to vector<2x128xf32>
    %202 = arith.mulf %201, %199 : vector<2x128xf32>
    %203 = arith.addf %198, %202 : vector<2x128xf32>
    %c19_i32 = arith.constant 19 : i32
    %204 = tpu.dynamic_rotate %34 by %c19_i32 dim 1 : vector<2x128xf32>, i32 -> vector<2x128xf32>
    %c5 = arith.constant 5 : index
    %c0_94 = arith.constant 0 : index
    %c0_95 = arith.constant 0 : index
    %205 = vector.load %arg6[%c5, %c0_94, %c0_95] : memref<49x2x128xf32, #tpu.memory_space<vmem>>, vector<1x2x128xf32>
    %206 = vector.shape_cast %205 : vector<1x2x128xf32> to vector<2x128xf32>
    %207 = arith.mulf %206, %204 : vector<2x128xf32>
    %c12_i32 = arith.constant 12 : i32
    %208 = tpu.dynamic_rotate %34 by %c12_i32 dim 1 : vector<2x128xf32>, i32 -> vector<2x128xf32>
    %c12 = arith.constant 12 : index
    %c0_96 = arith.constant 0 : index
    %c0_97 = arith.constant 0 : index
    %209 = vector.load %arg6[%c12, %c0_96, %c0_97] : memref<49x2x128xf32, #tpu.memory_space<vmem>>, vector<1x2x128xf32>
    %210 = vector.shape_cast %209 : vector<1x2x128xf32> to vector<2x128xf32>
    %211 = arith.mulf %210, %208 : vector<2x128xf32>
    %212 = arith.addf %207, %211 : vector<2x128xf32>
    %c5_i32 = arith.constant 5 : i32
    %213 = tpu.dynamic_rotate %34 by %c5_i32 dim 1 : vector<2x128xf32>, i32 -> vector<2x128xf32>
    %c19 = arith.constant 19 : index
    %c0_98 = arith.constant 0 : index
    %c0_99 = arith.constant 0 : index
    %214 = vector.load %arg6[%c19, %c0_98, %c0_99] : memref<49x2x128xf32, #tpu.memory_space<vmem>>, vector<1x2x128xf32>
    %215 = vector.shape_cast %214 : vector<1x2x128xf32> to vector<2x128xf32>
    %216 = arith.mulf %215, %213 : vector<2x128xf32>
    %217 = arith.addf %212, %216 : vector<2x128xf32>
    %c126_i32_100 = arith.constant 126 : i32
    %218 = tpu.dynamic_rotate %34 by %c126_i32_100 dim 1 : vector<2x128xf32>, i32 -> vector<2x128xf32>
    %c26 = arith.constant 26 : index
    %c0_101 = arith.constant 0 : index
    %c0_102 = arith.constant 0 : index
    %219 = vector.load %arg6[%c26, %c0_101, %c0_102] : memref<49x2x128xf32, #tpu.memory_space<vmem>>, vector<1x2x128xf32>
    %220 = vector.shape_cast %219 : vector<1x2x128xf32> to vector<2x128xf32>
    %221 = arith.mulf %220, %218 : vector<2x128xf32>
    %222 = arith.addf %217, %221 : vector<2x128xf32>
    %c119_i32_103 = arith.constant 119 : i32
    %223 = tpu.dynamic_rotate %34 by %c119_i32_103 dim 1 : vector<2x128xf32>, i32 -> vector<2x128xf32>
    %c33 = arith.constant 33 : index
    %c0_104 = arith.constant 0 : index
    %c0_105 = arith.constant 0 : index
    %224 = vector.load %arg6[%c33, %c0_104, %c0_105] : memref<49x2x128xf32, #tpu.memory_space<vmem>>, vector<1x2x128xf32>
    %225 = vector.shape_cast %224 : vector<1x2x128xf32> to vector<2x128xf32>
    %226 = arith.mulf %225, %223 : vector<2x128xf32>
    %227 = arith.addf %222, %226 : vector<2x128xf32>
    %c112_i32_106 = arith.constant 112 : i32
    %228 = tpu.dynamic_rotate %34 by %c112_i32_106 dim 1 : vector<2x128xf32>, i32 -> vector<2x128xf32>
    %c40 = arith.constant 40 : index
    %c0_107 = arith.constant 0 : index
    %c0_108 = arith.constant 0 : index
    %229 = vector.load %arg6[%c40, %c0_107, %c0_108] : memref<49x2x128xf32, #tpu.memory_space<vmem>>, vector<1x2x128xf32>
    %230 = vector.shape_cast %229 : vector<1x2x128xf32> to vector<2x128xf32>
    %231 = arith.mulf %230, %228 : vector<2x128xf32>
    %232 = arith.addf %227, %231 : vector<2x128xf32>
    %c105_i32 = arith.constant 105 : i32
    %233 = tpu.dynamic_rotate %34 by %c105_i32 dim 1 : vector<2x128xf32>, i32 -> vector<2x128xf32>
    %c47 = arith.constant 47 : index
    %c0_109 = arith.constant 0 : index
    %c0_110 = arith.constant 0 : index
    %234 = vector.load %arg6[%c47, %c0_109, %c0_110] : memref<49x2x128xf32, #tpu.memory_space<vmem>>, vector<1x2x128xf32>
    %235 = vector.shape_cast %234 : vector<1x2x128xf32> to vector<2x128xf32>
    %236 = arith.mulf %235, %233 : vector<2x128xf32>
    %237 = arith.addf %232, %236 : vector<2x128xf32>
    %c18_i32 = arith.constant 18 : i32
    %238 = tpu.dynamic_rotate %34 by %c18_i32 dim 1 : vector<2x128xf32>, i32 -> vector<2x128xf32>
    %c6 = arith.constant 6 : index
    %c0_111 = arith.constant 0 : index
    %c0_112 = arith.constant 0 : index
    %239 = vector.load %arg6[%c6, %c0_111, %c0_112] : memref<49x2x128xf32, #tpu.memory_space<vmem>>, vector<1x2x128xf32>
    %240 = vector.shape_cast %239 : vector<1x2x128xf32> to vector<2x128xf32>
    %241 = arith.mulf %240, %238 : vector<2x128xf32>
    %c11_i32 = arith.constant 11 : i32
    %242 = tpu.dynamic_rotate %34 by %c11_i32 dim 1 : vector<2x128xf32>, i32 -> vector<2x128xf32>
    %c13 = arith.constant 13 : index
    %c0_113 = arith.constant 0 : index
    %c0_114 = arith.constant 0 : index
    %243 = vector.load %arg6[%c13, %c0_113, %c0_114] : memref<49x2x128xf32, #tpu.memory_space<vmem>>, vector<1x2x128xf32>
    %244 = vector.shape_cast %243 : vector<1x2x128xf32> to vector<2x128xf32>
    %245 = arith.mulf %244, %242 : vector<2x128xf32>
    %246 = arith.addf %241, %245 : vector<2x128xf32>
    %c4_i32 = arith.constant 4 : i32
    %247 = tpu.dynamic_rotate %34 by %c4_i32 dim 1 : vector<2x128xf32>, i32 -> vector<2x128xf32>
    %c20 = arith.constant 20 : index
    %c0_115 = arith.constant 0 : index
    %c0_116 = arith.constant 0 : index
    %248 = vector.load %arg6[%c20, %c0_115, %c0_116] : memref<49x2x128xf32, #tpu.memory_space<vmem>>, vector<1x2x128xf32>
    %249 = vector.shape_cast %248 : vector<1x2x128xf32> to vector<2x128xf32>
    %250 = arith.mulf %249, %247 : vector<2x128xf32>
    %251 = arith.addf %246, %250 : vector<2x128xf32>
    %c125_i32 = arith.constant 125 : i32
    %252 = tpu.dynamic_rotate %34 by %c125_i32 dim 1 : vector<2x128xf32>, i32 -> vector<2x128xf32>
    %c27 = arith.constant 27 : index
    %c0_117 = arith.constant 0 : index
    %c0_118 = arith.constant 0 : index
    %253 = vector.load %arg6[%c27, %c0_117, %c0_118] : memref<49x2x128xf32, #tpu.memory_space<vmem>>, vector<1x2x128xf32>
    %254 = vector.shape_cast %253 : vector<1x2x128xf32> to vector<2x128xf32>
    %255 = arith.mulf %254, %252 : vector<2x128xf32>
    %256 = arith.addf %251, %255 : vector<2x128xf32>
    %c118_i32 = arith.constant 118 : i32
    %257 = tpu.dynamic_rotate %34 by %c118_i32 dim 1 : vector<2x128xf32>, i32 -> vector<2x128xf32>
    %c34 = arith.constant 34 : index
    %c0_119 = arith.constant 0 : index
    %c0_120 = arith.constant 0 : index
    %258 = vector.load %arg6[%c34, %c0_119, %c0_120] : memref<49x2x128xf32, #tpu.memory_space<vmem>>, vector<1x2x128xf32>
    %259 = vector.shape_cast %258 : vector<1x2x128xf32> to vector<2x128xf32>
    %260 = arith.mulf %259, %257 : vector<2x128xf32>
    %261 = arith.addf %256, %260 : vector<2x128xf32>
    %c111_i32 = arith.constant 111 : i32
    %262 = tpu.dynamic_rotate %34 by %c111_i32 dim 1 : vector<2x128xf32>, i32 -> vector<2x128xf32>
    %c41 = arith.constant 41 : index
    %c0_121 = arith.constant 0 : index
    %c0_122 = arith.constant 0 : index
    %263 = vector.load %arg6[%c41, %c0_121, %c0_122] : memref<49x2x128xf32, #tpu.memory_space<vmem>>, vector<1x2x128xf32>
    %264 = vector.shape_cast %263 : vector<1x2x128xf32> to vector<2x128xf32>
    %265 = arith.mulf %264, %262 : vector<2x128xf32>
    %266 = arith.addf %261, %265 : vector<2x128xf32>
    %c104_i32 = arith.constant 104 : i32
    %267 = tpu.dynamic_rotate %34 by %c104_i32 dim 1 : vector<2x128xf32>, i32 -> vector<2x128xf32>
    %c48 = arith.constant 48 : index
    %c0_123 = arith.constant 0 : index
    %c0_124 = arith.constant 0 : index
    %268 = vector.load %arg6[%c48, %c0_123, %c0_124] : memref<49x2x128xf32, #tpu.memory_space<vmem>>, vector<1x2x128xf32>
    %269 = vector.shape_cast %268 : vector<1x2x128xf32> to vector<2x128xf32>
    %270 = arith.mulf %269, %267 : vector<2x128xf32>
    %271 = arith.addf %266, %270 : vector<2x128xf32>
    %272 = arith.addf %68, %102 : vector<2x128xf32>
    %273 = arith.addf %136, %169 : vector<2x128xf32>
    %274 = arith.addf %203, %237 : vector<2x128xf32>
    %275 = arith.addf %272, %273 : vector<2x128xf32>
    %276 = arith.addf %274, %271 : vector<2x128xf32>
    %277 = arith.addf %275, %276 : vector<2x128xf32>
    %278 = vector.extract_strided_slice %277 {offsets = [0, 0], sizes = [1, 128], strides = [1, 1]} : vector<2x128xf32> to vector<1x128xf32>
    %279 = vector.extract_strided_slice %277 {offsets = [1, 0], sizes = [1, 128], strides = [1, 1]} : vector<2x128xf32> to vector<1x128xf32>
    %280 = arith.addf %278, %279 : vector<1x128xf32>
    %281 = arith.negf %280 : vector<1x128xf32>
    %282 = math.exp %281 : vector<1x128xf32>
    %cst_125 = arith.constant 1.000000e+00 : f32
    %283 = vector.broadcast %cst_125 : f32 to vector<1x128xf32>
    %284 = arith.addf %283, %282 : vector<1x128xf32>
    %285 = arith.divf %283, %284 : vector<1x128xf32>
    %c0_126 = arith.constant 0 : index
    %c0_127 = arith.constant 0 : index
    %c0_128 = arith.constant 0 : index
    %286 = vector.load %arg8[%c0_126, %c0_127, %c0_128] : memref<1x1x128xf32, #tpu.memory_space<vmem>>, vector<1x1x128xf32>
    %287 = vector.shape_cast %286 : vector<1x1x128xf32> to vector<1x128xf32>
    %288 = vector.shape_cast %285 : vector<1x128xf32> to vector<1x1x128xf32>
    tpu.vector_store %arg8[%c0_126, %c0_127, %c0_128], %288 {strides = array<i32>} : memref<1x1x128xf32, #tpu.memory_space<vmem>>, vector<1x1x128xf32>,
    return
  }
  func.func @transform_0(%arg0: i32) -> (i32, i32, i32) {
    %c0_i32 = arith.constant 0 : i32
    %c0_i32_0 = arith.constant 0 : i32
    %c0_i32_1 = arith.constant 0 : i32
    return %arg0, %c0_i32, %c0_i32_0 : i32, i32, i32
  }
  func.func @transform_1(%arg0: i32) -> (i32, i32) {
    %c0_i32 = arith.constant 0 : i32
    %c0_i32_0 = arith.constant 0 : i32
    %c0_i32_1 = arith.constant 0 : i32
    return %c0_i32, %c0_i32_0 : i32, i32
  }
  func.func @transform_2(%arg0: i32) -> (i32, i32) {
    %c0_i32 = arith.constant 0 : i32
    %c0_i32_0 = arith.constant 0 : i32
    %c0_i32_1 = arith.constant 0 : i32
    return %c0_i32, %c0_i32_0 : i32, i32
  }
  func.func @transform_3(%arg0: i32) -> (i32, i32) {
    %c0_i32 = arith.constant 0 : i32
    %c0_i32_0 = arith.constant 0 : i32
    %c0_i32_1 = arith.constant 0 : i32
    return %c0_i32, %c0_i32_0 : i32, i32
  }
  func.func @transform_4(%arg0: i32) -> (i32, i32) {
    %c0_i32 = arith.constant 0 : i32
    %c0_i32_0 = arith.constant 0 : i32
    %c0_i32_1 = arith.constant 0 : i32
    return %c0_i32, %c0_i32_0 : i32, i32
  }
  func.func @transform_5(%arg0: i32) -> (i32, i32, i32) {
    %c0_i32 = arith.constant 0 : i32
    %c0_i32_0 = arith.constant 0 : i32
    %c0_i32_1 = arith.constant 0 : i32
    %c0_i32_2 = arith.constant 0 : i32
    return %c0_i32, %c0_i32_0, %c0_i32_1 : i32, i32, i32
  }
  func.func @transform_6(%arg0: i32) -> (i32, i32) {
    %c0_i32 = arith.constant 0 : i32
    %c0_i32_0 = arith.constant 0 : i32
    %c0_i32_1 = arith.constant 0 : i32
    return %c0_i32, %c0_i32_0 : i32, i32
  }
  func.func @transform_7(%arg0: i32) -> (i32, i32, i32) {
    %c0_i32 = arith.constant 0 : i32
    %c0_i32_0 = arith.constant 0 : i32
    %c0_i32_1 = arith.constant 0 : i32
    return %arg0, %c0_i32, %c0_i32_0 : i32, i32, i32
  }
}

</mosaic_0001>

<llo_original>
// kernel: tpu_custom_call.1
$region0: #{tpu_custom_call.1}
  #allocation0 [shape = 'u32[]', space=smem, size = 0x4, offset = 0x4, fixed_abs, tag = 'smem constant byte address 0x4 - core index']
  #allocation1 [shape = 'u32[144,128]{1,0:T(1,128)}', space=vmem, size = 0x12000, scoped, tag = 'internal scratch']
  %s0 = inlined_call_operand.hbm [shape: bf16[2,48,128], index: 0, kind: input, shape index: {}]
  %s1 = inlined_call_operand.vmem [shape: bf16[32,48], index: 1, kind: input, shape index: {}]
  %s2 = inlined_call_operand.vmem [shape: f32[32,1], index: 2, kind: input, shape index: {}]
  %s3 = inlined_call_operand.hbm [shape: f32[64,288], index: 3, kind: input, shape index: {}]
  %s4 = inlined_call_operand.vmem [shape: f32[64,1], index: 4, kind: input, shape index: {}]
  %s5 = inlined_call_operand.vmem [shape: f32[49,2,128], index: 5, kind: input, shape index: {}]
  %s6 = inlined_call_operand.vmem [shape: f32[1,128], index: 6, kind: input, shape index: {}]
  %s7 = inlined_call_operand.hbm [shape: f32[2,1,128], index: 7, kind: output, shape index: {}]
  %s8 = sld [smem:[#allocation0]]
  $region69: #{tpu_custom_call.1} parent=0
    _
  %s10 = ssub.s32 1, %s8
  %s11 = scalar_select 0, %s10, %s8
  $region1: #{tpu_custom_call.1} parent=0
    #allocation2 [shape = 'u8[24576]{0}', space=vmem, size = 0x6000, scoped, tag = 'input window, operand 0']
    #allocation3 [shape = 's32[2]{0}', space=sflag, size = 0x8, scoped, tag = 'scoped memory for tpu_custom_call.1']
    #allocation4 [shape = 's32[2]{0}', space=sflag, size = 0x8, scoped, tag = 'scoped memory for tpu_custom_call.1']
    #allocation5 [shape = 'u8[98304]{0}', space=vmem, size = 0x18000, scoped, tag = 'input window, operand 3, single buffered']
    #allocation6 [shape = 's32[1]{0}', space=sflag, size = 0x4, scoped, tag = 'scoped memory for tpu_custom_call.1']
    #allocation7 [shape = 'u8[1024]{0}', space=vmem, size = 0x400, scoped, tag = 'output window, operand 0']
    %12 = vsyncpa [#allocation3], 0
    %s13 = scalar_lea.sflag [#allocation3], 1
    %14 = vsyncpa %s13, 0
    %15 = vsyncpa [#allocation6], 0
    %16 = vsyncpa [#allocation4], 0
    %s17 = scalar_lea.sflag [#allocation4], 1
    %18 = vsyncpa %s17, 0
    loop: start=0, step=1, limit=4
    $region2: #{tpu_custom_call.1} parent=1 // loop_pre_header
      _
    $region3: #{tpu_custom_call.1} parent=1 // loop_header
      %s20 = sphi 0, %s24
      %p21 = scmp.ge.s32.totalorder %s20, 4
      %s30 = sphi 0, %s32
      %s33 = sphi 0, %s30
      %s34 = sphi 0, %s33
      %s50 = sphi 0, %s34
      %s54 = sphi 0, %s54
      %s56 = sphi 0, %s54
      %s57 = sphi 0, %s56
      %s71 = sphi 0, %s57
      %s75 = sphi 0, %s75
      %s77 = sphi 0, %s75
      %s78 = sphi 0, %s77
      %s92 = sphi 0, %s78
      %s96 = sphi 0, %s96
      %s98 = sphi 0, %s96
      %s99 = sphi 0, %s98
      %s113 = sphi 0, %s99
      %s117 = sphi 0, %s117
      %s119 = sphi 0, %s117
      %s120 = sphi 0, %s119
      %s134 = sphi 0, %s120
      %s138 = sphi 0, %s138
      %s140 = sphi 0, %s138
      %s141 = sphi 0, %s140
      %s155 = sphi 0, %s141
      %s159 = sphi 0, %s159
      %s161 = sphi 0, %s159
      %s162 = sphi 0, %s161
      %s176 = sphi 0, %s162
      %s182 = sphi 0, %s184
      %s185 = sphi 0, %s182
      %s186 = sphi 0, %s185
      %s202 = sphi 0, %s186
    $region4: #{tpu_custom_call.1} parent=1 // loop_header_branch
      %23 = sbr.rel (%p21) target = $region8
    $region5: #{tpu_custom_call.1} parent=1 // loop_body
      %s25 = ssub.s32 %s20, 1
      %s26 = ssub.s32 %s20, 2
      %s27 = sadd.s32 %s20, 1
      %s28 = ssub.s32 %s20, %s27
      %p29 = scmp.eq.s32.totalorder %s28, 0
      %s31 = sadd.s32 %s30, 1
      %s32 = scalar_select %p29, %s30, %s31
      %p35 = pneg %p29
      %p36 = scmp.eq.s32.totalorder %s20, 1
      %p37 = por %p35, %p36
      %p38 = scmp.ne.s32.totalorder %s30, %s33
      %p39 = scmp.eq.s32.totalorder %s20, 0
      %p40 = por %p38, %p39
      %p41 = scmp.ne.s32.totalorder %s30, %s33
      %p42 = scmp.eq.s32.totalorder %s25, 1
      %p43 = por %p41, %p42
      %p44 = scmp.ne.s32.totalorder %s33, %s34
      %p45 = scmp.eq.s32.totalorder %s25, 0
      %p46 = por %p44, %p45
      %p47 = scmp.ne.s32.totalorder %s33, %s34
      %p48 = scmp.eq.s32.totalorder %s26, 1
      %p49 = por %p47, %p48
      %p51 = scmp.ne.s32.totalorder %s34, %s50
      %p52 = scmp.eq.s32.totalorder %s26, 0
      %p53 = por %p51, %p52
      %s55 = sadd.s32 %s54, 1
      %p58 = scmp.eq.s32.totalorder %s20, 1
      %p59 = scmp.ne.s32.totalorder %s54, %s56
      %p60 = scmp.eq.s32.totalorder %s20, 0
      %p61 = por %p59, %p60
      %p62 = scmp.ne.s32.totalorder %s54, %s56
      %p63 = scmp.eq.s32.totalorder %s25, 1
      %p64 = por %p62, %p63
      %p65 = scmp.ne.s32.totalorder %s56, %s57
      %p66 = scmp.eq.s32.totalorder %s25, 0
      %p67 = por %p65, %p66
      %p68 = scmp.ne.s32.totalorder %s56, %s57
      %p69 = scmp.eq.s32.totalorder %s26, 1
      %p70 = por %p68, %p69
      %p72 = scmp.ne.s32.totalorder %s57, %s71
      %p73 = scmp.eq.s32.totalorder %s26, 0
      %p74 = por %p72, %p73
      %s76 = sadd.s32 %s75, 1
      %p79 = scmp.eq.s32.totalorder %s20, 1
      %p80 = scmp.ne.s32.totalorder %s75, %s77
      %p81 = scmp.eq.s32.totalorder %s20, 0
      %p82 = por %p80, %p81
      %p83 = scmp.ne.s32.totalorder %s75, %s77
      %p84 = scmp.eq.s32.totalorder %s25, 1
      %p85 = por %p83, %p84
      %p86 = scmp.ne.s32.totalorder %s77, %s78
      %p87 = scmp.eq.s32.totalorder %s25, 0
      %p88 = por %p86, %p87
      %p89 = scmp.ne.s32.totalorder %s77, %s78
      %p90 = scmp.eq.s32.totalorder %s26, 1
      %p91 = por %p89, %p90
      %p93 = scmp.ne.s32.totalorder %s78, %s92
      %p94 = scmp.eq.s32.totalorder %s26, 0
      %p95 = por %p93, %p94
      %s97 = sadd.s32 %s96, 1
      %p100 = scmp.eq.s32.totalorder %s20, 1
      %p101 = scmp.ne.s32.totalorder %s96, %s98
      %p102 = scmp.eq.s32.totalorder %s20, 0
      %p103 = por %p101, %p102
      %p104 = scmp.ne.s32.totalorder %s96, %s98
      %p105 = scmp.eq.s32.totalorder %s25, 1
      %p106 = por %p104, %p105
      %p107 = scmp.ne.s32.totalorder %s98, %s99
      %p108 = scmp.eq.s32.totalorder %s25, 0
      %p109 = por %p107, %p108
      %p110 = scmp.ne.s32.totalorder %s98, %s99
      %p111 = scmp.eq.s32.totalorder %s26, 1
      %p112 = por %p110, %p111
      %p114 = scmp.ne.s32.totalorder %s99, %s113
      %p115 = scmp.eq.s32.totalorder %s26, 0
      %p116 = por %p114, %p115
      %s118 = sadd.s32 %s117, 1
      %p121 = scmp.eq.s32.totalorder %s20, 1
      %p122 = scmp.ne.s32.totalorder %s117, %s119
      %p123 = scmp.eq.s32.totalorder %s20, 0
      %p124 = por %p122, %p123
      %p125 = scmp.ne.s32.totalorder %s117, %s119
      %p126 = scmp.eq.s32.totalorder %s25, 1
      %p127 = por %p125, %p126
      %p128 = scmp.ne.s32.totalorder %s119, %s120
      %p129 = scmp.eq.s32.totalorder %s25, 0
      %p130 = por %p128, %p129
      %p131 = scmp.ne.s32.totalorder %s119, %s120
      %p132 = scmp.eq.s32.totalorder %s26, 1
      %p133 = por %p131, %p132
      %p135 = scmp.ne.s32.totalorder %s120, %s134
      %p136 = scmp.eq.s32.totalorder %s26, 0
      %p137 = por %p135, %p136
      %s139 = sadd.s32 %s138, 1
      %p142 = scmp.eq.s32.totalorder %s20, 1
      %p143 = scmp.ne.s32.totalorder %s138, %s140
      %p144 = scmp.eq.s32.totalorder %s20, 0
      %p145 = por %p143, %p144
      %p146 = scmp.ne.s32.totalorder %s138, %s140
      %p147 = scmp.eq.s32.totalorder %s25, 1
      %p148 = por %p146, %p147
      %p149 = scmp.ne.s32.totalorder %s140, %s141
      %p150 = scmp.eq.s32.totalorder %s25, 0
      %p151 = por %p149, %p150
      %p152 = scmp.ne.s32.totalorder %s140, %s141
      %p153 = scmp.eq.s32.totalorder %s26, 1
      %p154 = por %p152, %p153
      %p156 = scmp.ne.s32.totalorder %s141, %s155
      %p157 = scmp.eq.s32.totalorder %s26, 0
      %p158 = por %p156, %p157
      %s160 = sadd.s32 %s159, 1
      %p163 = scmp.eq.s32.totalorder %s20, 1
      %p164 = scmp.ne.s32.totalorder %s159, %s161
      %p165 = scmp.eq.s32.totalorder %s20, 0
      %p166 = por %p164, %p165
      %p167 = scmp.ne.s32.totalorder %s159, %s161
      %p168 = scmp.eq.s32.totalorder %s25, 1
      %p169 = por %p167, %p168
      %p170 = scmp.ne.s32.totalorder %s161, %s162
      %p171 = scmp.eq.s32.totalorder %s25, 0
      %p172 = por %p170, %p171
      %p173 = scmp.ne.s32.totalorder %s161, %s162
      %p174 = scmp.eq.s32.totalorder %s26, 1
      %p175 = por %p173, %p174
      %p177 = scmp.ne.s32.totalorder %s162, %s176
      %p178 = scmp.eq.s32.totalorder %s26, 0
      %p179 = por %p177, %p178
      %s180 = ssub.s32 %s20, %s27
      %p181 = scmp.eq.s32.totalorder %s180, 0
      %s183 = sadd.s32 %s182, 1
      %s184 = scalar_select %p181, %s182, %s183
      %p187 = pneg %p181
      %p188 = scmp.eq.s32.totalorder %s20, 1
      %p189 = por %p187, %p188
      %p190 = scmp.ne.s32.totalorder %s182, %s185
      %p191 = scmp.eq.s32.totalorder %s20, 0
      %p192 = por %p190, %p191
      %p193 = scmp.ne.s32.totalorder %s182, %s185
      %p194 = scmp.eq.s32.totalorder %s25, 1
      %p195 = por %p193, %p194
      %p196 = scmp.ne.s32.totalorder %s185, %s186
      %p197 = scmp.eq.s32.totalorder %s25, 0
      %p198 = por %p196, %p197
      %p199 = scmp.ne.s32.totalorder %s185, %s186
      %p200 = scmp.eq.s32.totalorder %s26, 1
      %p201 = por %p199, %p200
      %p203 = scmp.ne.s32.totalorder %s186, %s202
      %p204 = scmp.eq.s32.totalorder %s26, 0
      %p205 = por %p203, %p204
      %p206 = scmp.le.s32.totalorder 1, %s20
      %p207 = scmp.lt.s32.totalorder %s20, 3
      %p208 = pnand %p206, %p207
      %p209 = pneg %p208
      // Predicated region
      $region9: #{tpu_custom_call.1} parent=5 // pred_check
        _
      $region10: #{tpu_custom_call.1} parent=5 // pred_check_branch
        %211 = sbr.rel (%p208) target = $region12
      $region11: #{tpu_custom_call.1} parent=5 // pred_region
        %s212 = ssub.s32 %s20, 1
        // Predicated region
        $region13: #{tpu_custom_call.1} parent=11 // pred_check
          %p213 = pneg %p67
        $region14: #{tpu_custom_call.1} parent=11 // pred_check_branch
          %215 = sbr.rel (%p213) target = $region16
        $region15: #{tpu_custom_call.1} parent=11 // pred_region
          _
        $region16: #{tpu_custom_call.1} parent=11 // pred_fallthru
          _
        // Predicated region
        $region17: #{tpu_custom_call.1} parent=11 // pred_check
          %p216 = pneg %p88
        $region18: #{tpu_custom_call.1} parent=11 // pred_check_branch
          %218 = sbr.rel (%p216) target = $region20
        $region19: #{tpu_custom_call.1} parent=11 // pred_region
          _
        $region20: #{tpu_custom_call.1} parent=11 // pred_fallthru
          _
        // Predicated region
        $region21: #{tpu_custom_call.1} parent=11 // pred_check
          %p219 = pneg %p109
        $region22: #{tpu_custom_call.1} parent=11 // pred_check_branch
          %221 = sbr.rel (%p219) target = $region24
        $region23: #{tpu_custom_call.1} parent=11 // pred_region
          %s223 = ssub.s32 3072, 3072
          %224 = vsyncadd [#allocation6], %s223
          %s225 = sshll.u32 [#allocation5], 4
          %s226 = int_to_ptr.vmem [resolvable:$true] %s225
          %231 = dma.hbm_to_vmem [thread:$0]  %s3, 3072, %s226, [#allocation6], 384, 384, 24
        $region24: #{tpu_custom_call.1} parent=11 // pred_fallthru
          _
        // Predicated region
        $region25: #{tpu_custom_call.1} parent=11 // pred_check
          %p232 = pneg %p130
        $region26: #{tpu_custom_call.1} parent=11 // pred_check_branch
          %234 = sbr.rel (%p232) target = $region28
        $region27: #{tpu_custom_call.1} parent=11 // pred_region
          _
        $region28: #{tpu_custom_call.1} parent=11 // pred_fallthru
          _
        // Predicated region
        $region29: #{tpu_custom_call.1} parent=11 // pred_check
          %p235 = pneg %p151
        $region30: #{tpu_custom_call.1} parent=11 // pred_check_branch
          %237 = sbr.rel (%p235) target = $region32
        $region31: #{tpu_custom_call.1} parent=11 // pred_region
          _
        $region32: #{tpu_custom_call.1} parent=11 // pred_fallthru
          _
        // Predicated region
        $region33: #{tpu_custom_call.1} parent=11 // pred_check
          %p238 = pneg %p172
        $region34: #{tpu_custom_call.1} parent=11 // pred_check_branch
          %240 = sbr.rel (%p238) target = $region36
        $region35: #{tpu_custom_call.1} parent=11 // pred_region
          _
        $region36: #{tpu_custom_call.1} parent=11 // pred_fallthru
          _
      $region12: #{tpu_custom_call.1} parent=5 // pred_fallthru
        _
      %p241 = scmp.lt.s32.totalorder %s20, 2
      // Predicated region
      $region37: #{tpu_custom_call.1} parent=5 // pred_check
        %p242 = pneg %p241
      $region38: #{tpu_custom_call.1} parent=5 // pred_check_branch
        %244 = sbr.rel (%p242) target = $region40
      $region39: #{tpu_custom_call.1} parent=5 // pred_region
        // Predicated region
        $region41: #{tpu_custom_call.1} parent=39 // pred_check
          %p245 = pneg %p40
        $region42: #{tpu_custom_call.1} parent=39 // pred_check_branch
          %247 = sbr.rel (%p245) target = $region44
        $region43: #{tpu_custom_call.1} parent=39 // pred_region
          %s248 = sand.u32 %s30, 1
          %s249 = scalar_lea.sflag [#allocation3], %s248
          %s250 = sand.u32 %s30, 1
          %s251 = smul.addr %s250, 24
          %s252 = scalar_lea.vmem [#allocation2], %s251
          %s254 = ssub.s32 384, 384
          %255 = vsyncadd %s249, %s254
          %s256 = smul.addr %s20, 6
          %s257 = smul.addr %s256, 64
          %s258 = scalar_lea.hbm %s0, %s257
          %s259 = sshll.u32 %s252, 4
          %s260 = int_to_ptr.vmem [resolvable:$true] %s259
          %265 = dma.hbm_to_vmem [thread:$0]  %s258, 384, %s260, %s249, 64, 64, 4
        $region44: #{tpu_custom_call.1} parent=39 // pred_fallthru
          _
      $region40: #{tpu_custom_call.1} parent=5 // pred_fallthru
        _
      %p266 = scmp.le.s32.totalorder 1, %s20
      %p267 = scmp.lt.s32.totalorder %s20, 3
      %p268 = pnand %p266, %p267
      %p269 = pneg %p268
      // Predicated region
      $region45: #{tpu_custom_call.1} parent=5 // pred_check
        _
      $region46: #{tpu_custom_call.1} parent=5 // pred_check_branch
        %271 = sbr.rel (%p268) target = $region48
      $region47: #{tpu_custom_call.1} parent=5 // pred_region
        %s272 = ssub.s32 %s20, 1
        %s273 = sand.u32 %s33, 1
        %s274 = scalar_lea.sflag [#allocation3], %s273
        %s275 = sand.u32 %s33, 1
        %s276 = smul.addr %s275, 24
        %s277 = scalar_lea.vmem [#allocation2], %s276
        // Predicated region
        $region49: #{tpu_custom_call.1} parent=47 // pred_check
          %p278 = pneg %p46
        $region50: #{tpu_custom_call.1} parent=47 // pred_check_branch
          %280 = sbr.rel (%p278) target = $region52
        $region51: #{tpu_custom_call.1} parent=47 // pred_region
          %281 = dma.done %s274, 384
        $region52: #{tpu_custom_call.1} parent=47 // pred_fallthru
          _
        // Predicated region
        $region53: #{tpu_custom_call.1} parent=47 // pred_check
          %p282 = pneg %p109
        $region54: #{tpu_custom_call.1} parent=47 // pred_check_branch
          %284 = sbr.rel (%p282) target = $region56
        $region55: #{tpu_custom_call.1} parent=47 // pred_region
          %285 = dma.done [#allocation6], 3072
        $region56: #{tpu_custom_call.1} parent=47 // pred_fallthru
          _
        %s286 = sand.u32 %s33, 1
        %s287 = scalar_lea.sflag [#allocation3], %s286
        %s288 = sand.u32 %s33, 1
        %s289 = smul.addr %s288, 24
        %s290 = scalar_lea.vmem [#allocation2], %s289
        %p291 = pneg %p46
        %p292 = pneg %p43
        %p293 = pneg %p67
        %p294 = pneg %p64
        %p295 = pneg %p88
        %p296 = pneg %p85
        %p297 = pneg %p109
        %p298 = pneg %p106
        %p299 = pneg %p130
        %p300 = pneg %p127
        %p301 = pneg %p151
        %p302 = pneg %p148
        %p303 = pneg %p172
        %p304 = pneg %p169
        %p305 = pneg %p198
        %p306 = pneg %p195
        %s307 = sand.u32 %s185, 1
        %s308 = scalar_lea.sflag [#allocation4], %s307
        %s309 = sand.u32 %s185, 1
        %s310 = scalar_lea.vmem [#allocation7], %s309
        %v312 = vld [vmem:[%s1] sm:$0xf]
        %v313 = vld [vmem:[%s1 + $0x4] sm:$0xf]
        %v314 = vld [vmem:[%s1 + $0x8] sm:$0xf]
        %v315 = vld [vmem:[%s1 + $0xc] sm:$0xf]
        %v316 = vld [vmem:[%s277] sm:$0xf]
        %v317 = vld [vmem:[%s277 + $0x4] sm:$0xf]
        %v318 = vld [vmem:[%s277 + $0x8] sm:$0xf]
        %v319 = vld [vmem:[%s277 + $0xc] sm:$0xf]
        %v320 = vld [vmem:[%s277 + $0x10] sm:$0xf]
        %v321 = vld [vmem:[%s277 + $0x14] sm:$0xf]
        %v322 = vld [vmem:[%s2] sm:$0xff]
        %v323 = vld [vmem:[%s2 + $0x8] sm:$0xff]
        %v324 = vld [vmem:[%s2 + $0x10] sm:$0xff]
        %v325 = vld [vmem:[%s2 + $0x18] sm:$0xff]
        %327 = vset.pattern.permute.xlu0 0
        %328 = vperm.xlu0 %327, %v322
        %v329 = vpop.permute.xlu0 %328
        %332 = vset.pattern.permute.xlu0 0
        %333 = vperm.xlu0 %332, %v323
        %v334 = vpop.permute.xlu0 %333
        %337 = vset.pattern.permute.xlu0 0
        %338 = vperm.xlu0 %337, %v324
        %v339 = vpop.permute.xlu0 %338
        %342 = vset.pattern.permute.xlu0 0
        %343 = vperm.xlu0 %342, %v325
        %v344 = vpop.permute.xlu0 %343
        %v350 = vunpack.c.l.b16 %v312
        %v351 = vunpack.c.l.b16 %v313
        %v352 = vunpack.c.l.b16 %v314
        %v353 = vunpack.c.l.b16 %v315
        %v354 = vpack.c.b16 %v351, %v350
        %v355 = vpack.c.b16 %v353, %v352
        %v362 = vunpack.c.l.b16 %v316
        %v363 = vunpack.c.l.b16 %v317
        %v364 = vunpack.c.l.b16 %v318
        %v365 = vunpack.c.l.b16 %v319
        %v366 = vunpack.c.l.b16 %v320
        %v367 = vunpack.c.l.b16 %v321
        %v368 = vpack.c.b16 %v363, %v362
        %v369 = vpack.c.b16 %v365, %v364
        %v370 = vpack.c.b16 %v367, %v366
        %vm374 = vcmask 392192
        %v376 = vsel %vm374, %v354, 0
        %v379 = vsel %vm374, %v355, 0
        %381 = vmatprep.subr.bf16.mxu0 0
        %382 = vmatpush1.bf16.msra.mxu0 %v368
        %383 = vmatprep.subr.bf16.mxu0 0
        %384 = vmatpush1.bf16.msra.mxu0 %v369
        %385 = vmatprep.subr.bf16.mxu0 0
        %386 = vmatpush1.bf16.msra.mxu0 %v370
        %387 = vmatprep.subr.bf16.mxu0 0
        %388 = vmatpush1.bf16.msra.mxu0 0
        %389 = vmatprep.subr.bf16.mxu0 0
        %390 = vmatpush1.bf16.msra.mxu0 0
        %391 = vmatprep.subr.bf16.mxu0 0
        %392 = vmatpush1.bf16.msra.mxu0 0
        %393 = vmatprep.subr.bf16.mxu0 0
        %394 = vmatpush1.bf16.msra.mxu0 0
        %395 = vmatprep.subr.bf16.mxu0 0
        %396 = vmatpush1.bf16.msra.mxu0 0
        %397 = vmatprep.subr.bf16.mxu0 0
        %398 = vmatpush1.bf16.msra.mxu0 0
        %399 = vmatprep.subr.bf16.mxu0 0
        %400 = vmatpush1.bf16.msra.mxu0 0
        %401 = vmatprep.subr.bf16.mxu0 0
        %402 = vmatpush1.bf16.msra.mxu0 0
        %403 = vmatprep.subr.bf16.mxu0 0
        %404 = vmatpush1.bf16.msra.mxu0 0
        %405 = vmatprep.subr.bf16.mxu0 0
        %406 = vmatpush1.bf16.msra.mxu0 0
        %407 = vmatprep.subr.bf16.mxu0 0
        %408 = vmatpush1.bf16.msra.mxu0 0
        %409 = vmatprep.subr.bf16.mxu0 0
        %410 = vmatpush1.bf16.msra.mxu0 0
        %411 = vmatprep.subr.bf16.mxu0 0
        %412 = vmatpush1.bf16.msra.mxu0 0
        %413 = vmatprep.mubr.bf16.mxu0 0
        %414 = vmatmul.mubr.bf16.gmra.mrb[0].mxu0 %v376
        %v415 = vpop.f32.mrb[0].mxu0
        %v416 = vadd.f32 %v329, %v415
        %v417 = vpop.f32.mrb[0].mxu0
        %v418 = vpop.f32.mrb[0].mxu0
        %v419 = vadd.f32 %v334, %v418
        %v420 = vpop.f32.mrb[0].mxu0
        %421 = vmatprep.mubr.bf16.mxu0 0
        %422 = vmatmul.mubr.bf16.gmra.mrb[0].mxu0 %v379
        %v423 = vpop.f32.mrb[0].mxu0
        %v424 = vadd.f32 %v339, %v423
        %v425 = vpop.f32.mrb[0].mxu0
        %v426 = vpop.f32.mrb[0].mxu0
        %v427 = vadd.f32 %v344, %v426
        %v428 = vpop.f32.mrb[0].mxu0
        %429 = vdwg.mxu0
        %v430 = vmax.f32 %v416, 0.0
        %v431 = vmax.f32 %v419, 0.0
        %v432 = vmax.f32 %v424, 0.0
        %v433 = vmax.f32 %v427, 0.0
        %434 = vrot.lane.b32.xlu0 %v430, 127
        %v435 = vpop.permute.xlu0 %434
        %436 = vrot.lane.b32.xlu0 %v431, 127
        %v437 = vpop.permute.xlu0 %436
        %438 = vrot.lane.b32.xlu0 %v432, 127
        %v439 = vpop.permute.xlu0 %438
        %440 = vrot.lane.b32.xlu0 %v433, 127
        %v441 = vpop.permute.xlu0 %440
        %442 = vrot.lane.b32.xlu0 %v430, 126
        %v443 = vpop.permute.xlu0 %442
        %444 = vrot.lane.b32.xlu0 %v431, 126
        %v445 = vpop.permute.xlu0 %444
        %446 = vrot.lane.b32.xlu0 %v432, 126
        %v447 = vpop.permute.xlu0 %446
        %448 = vrot.lane.b32.xlu0 %v433, 126
        %v449 = vpop.permute.xlu0 %448
        %450 = vrot.lane.b32.xlu0 %v430, 121
        %v451 = vpop.permute.xlu0 %450
        %452 = vrot.lane.b32.xlu0 %v431, 121
        %v453 = vpop.permute.xlu0 %452
        %454 = vrot.lane.b32.xlu0 %v432, 121
        %v455 = vpop.permute.xlu0 %454
        %456 = vrot.lane.b32.xlu0 %v433, 121
        %v457 = vpop.permute.xlu0 %456
        %458 = vrot.lane.b32.xlu0 %v430, 120
        %v459 = vpop.permute.xlu0 %458
        %460 = vrot.lane.b32.xlu0 %v431, 120
        %v461 = vpop.permute.xlu0 %460
        %462 = vrot.lane.b32.xlu0 %v432, 120
        %v463 = vpop.permute.xlu0 %462
        %464 = vrot.lane.b32.xlu0 %v433, 120
        %v465 = vpop.permute.xlu0 %464
        %466 = vrot.lane.b32.xlu0 %v430, 119
        %v467 = vpop.permute.xlu0 %466
        %468 = vrot.lane.b32.xlu0 %v431, 119
        %v469 = vpop.permute.xlu0 %468
        %470 = vrot.lane.b32.xlu0 %v432, 119
        %v471 = vpop.permute.xlu0 %470
        %472 = vrot.lane.b32.xlu0 %v433, 119
        %v473 = vpop.permute.xlu0 %472
        %474 = vrot.lane.b32.xlu0 %v430, 114
        %v475 = vpop.permute.xlu0 %474
        %476 = vrot.lane.b32.xlu0 %v431, 114
        %v477 = vpop.permute.xlu0 %476
        %478 = vrot.lane.b32.xlu0 %v432, 114
        %v479 = vpop.permute.xlu0 %478
        %480 = vrot.lane.b32.xlu0 %v433, 114
        %v481 = vpop.permute.xlu0 %480
        %482 = vrot.lane.b32.xlu0 %v430, 113
        %v483 = vpop.permute.xlu0 %482
        %484 = vrot.lane.b32.xlu0 %v431, 113
        %v485 = vpop.permute.xlu0 %484
        %486 = vrot.lane.b32.xlu0 %v432, 113
        %v487 = vpop.permute.xlu0 %486
        %488 = vrot.lane.b32.xlu0 %v433, 113
        %v489 = vpop.permute.xlu0 %488
        %490 = vrot.lane.b32.xlu0 %v430, 112
        %v491 = vpop.permute.xlu0 %490
        %492 = vrot.lane.b32.xlu0 %v431, 112
        %v493 = vpop.permute.xlu0 %492
        %494 = vrot.lane.b32.xlu0 %v432, 112
        %v495 = vpop.permute.xlu0 %494
        %496 = vrot.lane.b32.xlu0 %v433, 112
        %v497 = vpop.permute.xlu0 %496
        %v498 = vld [vmem:[#allocation5] sm:$0xff]
        %v499 = vld [vmem:[#allocation5 + $0x8] sm:$0xff]
        %v500 = vld [vmem:[#allocation5 + $0x10] sm:$0xff]
        %v501 = vld [vmem:[#allocation5 + $0x18] sm:$0xff]
        %v502 = vld [vmem:[#allocation5 + $0x20] sm:$0xff]
        %v503 = vld [vmem:[#allocation5 + $0x28] sm:$0xff]
        %v504 = vld [vmem:[#allocation5 + $0x30] sm:$0xff]
        %v505 = vld [vmem:[#allocation5 + $0x38] sm:$0xff]
        %v506 = vld [vmem:[#allocation5 + $0x40] sm:$0xff]
        %v507 = vld [vmem:[#allocation5 + $0x48] sm:$0xff]
        %v508 = vld [vmem:[#allocation5 + $0x50] sm:$0xff]
        %v509 = vld [vmem:[#allocation5 + $0x58] sm:$0xff]
        %v510 = vld [vmem:[#allocation5 + $0x60] sm:$0xff]
        %v511 = vld [vmem:[#allocation5 + $0x68] sm:$0xff]
        %v512 = vld [vmem:[#allocation5 + $0x70] sm:$0xff]
        %v513 = vld [vmem:[#allocation5 + $0x78] sm:$0xff]
        %v514 = vld [vmem:[#allocation5 + $0x80] sm:$0xff]
        %v515 = vld [vmem:[#allocation5 + $0x88] sm:$0xff]
        %v516 = vld [vmem:[#allocation5 + $0x90] sm:$0xff]
        %v517 = vld [vmem:[#allocation5 + $0x98] sm:$0xff]
        %v518 = vld [vmem:[#allocation5 + $0xa0] sm:$0xff]
        %v519 = vld [vmem:[#allocation5 + $0xa8] sm:$0xff]
        %v520 = vld [vmem:[#allocation5 + $0xb0] sm:$0xff]
        %v521 = vld [vmem:[#allocation5 + $0xb8] sm:$0xff]
        %v522 = vld [vmem:[%s4] sm:$0xff]
        %v523 = vld [vmem:[%s4 + $0x8] sm:$0xff]
        %v524 = vld [vmem:[%s4 + $0x10] sm:$0xff]
        %v525 = vld [vmem:[%s4 + $0x18] sm:$0xff]
        %v526 = vld [vmem:[%s4 + $0x20] sm:$0xff]
        %v527 = vld [vmem:[%s4 + $0x28] sm:$0xff]
        %v528 = vld [vmem:[%s4 + $0x30] sm:$0xff]
        %v529 = vld [vmem:[%s4 + $0x38] sm:$0xff]
        %531 = vset.pattern.permute.xlu0 0
        %532 = vperm.xlu0 %531, %v522
        %v533 = vpop.permute.xlu0 %532
        %536 = vset.pattern.permute.xlu0 0
        %537 = vperm.xlu0 %536, %v523
        %v538 = vpop.permute.xlu0 %537
        %541 = vset.pattern.permute.xlu0 0
        %542 = vperm.xlu0 %541, %v524
        %v543 = vpop.permute.xlu0 %542
        %546 = vset.pattern.permute.xlu0 0
        %547 = vperm.xlu0 %546, %v525
        %v548 = vpop.permute.xlu0 %547
        %551 = vset.pattern.permute.xlu0 0
        %552 = vperm.xlu0 %551, %v526
        %v553 = vpop.permute.xlu0 %552
        %556 = vset.pattern.permute.xlu0 0
        %557 = vperm.xlu0 %556, %v527
        %v558 = vpop.permute.xlu0 %557
        %561 = vset.pattern.permute.xlu0 0
        %562 = vperm.xlu0 %561, %v528
        %v563 = vpop.permute.xlu0 %562
        %566 = vset.pattern.permute.xlu0 0
        %567 = vperm.xlu0 %566, %v529
        %v568 = vpop.permute.xlu0 %567
        %vm570 = vcmask 261120
        %v572 = vsel %vm570, %v500, 0
        %v575 = vsel %vm570, %v503, 0
        %v578 = vsel %vm570, %v506, 0
        %v581 = vsel %vm570, %v509, 0
        %v584 = vsel %vm570, %v512, 0
        %v587 = vsel %vm570, %v515, 0
        %v590 = vsel %vm570, %v518, 0
        %v593 = vsel %vm570, %v521, 0
        %595 = vmatprep.subr.mxu0 0.0
        %596 = vmatpush1.msra.mxu0 %v430
        %597 = vmatprep.subr.mxu0 0.0
        %598 = vmatpush1.msra.mxu0 %v431
        %599 = vmatprep.subr.mxu0 0.0
        %600 = vmatpush1.msra.mxu0 %v432
        %601 = vmatprep.subr.mxu0 0.0
        %602 = vmatpush1.msra.mxu0 %v433
        %603 = vmatprep.subr.mxu0 0.0
        %604 = vmatpush1.msra.mxu0 %v435
        %605 = vmatprep.subr.mxu0 0.0
        %606 = vmatpush1.msra.mxu0 %v437
        %607 = vmatprep.subr.mxu0 0.0
        %608 = vmatpush1.msra.mxu0 %v439
        %609 = vmatprep.subr.mxu0 0.0
        %610 = vmatpush1.msra.mxu0 %v441
        %611 = vmatprep.subr.mxu0 0.0
        %612 = vmatpush1.msra.mxu0 %v443
        %613 = vmatprep.subr.mxu0 0.0
        %614 = vmatpush1.msra.mxu0 %v445
        %615 = vmatprep.subr.mxu0 0.0
        %616 = vmatpush1.msra.mxu0 %v447
        %617 = vmatprep.subr.mxu0 0.0
        %618 = vmatpush1.msra.mxu0 %v449
        %619 = vmatprep.subr.mxu0 0.0
        %620 = vmatpush1.msra.mxu0 %v451
        %621 = vmatprep.subr.mxu0 0.0
        %622 = vmatpush1.msra.mxu0 %v453
        %623 = vmatprep.subr.mxu0 0.0
        %624 = vmatpush1.msra.mxu0 %v455
        %625 = vmatprep.subr.mxu0 0.0
        %626 = vmatpush1.msra.mxu0 %v457
        %627 = vmatprep.subr.mxu0 0.0
        %628 = vmatpush1.msra.mxu0 %v459
        %629 = vmatprep.subr.mxu0 0.0
        %630 = vmatpush1.msra.mxu0 %v461
        %631 = vmatprep.subr.mxu0 0.0
        %632 = vmatpush1.msra.mxu0 %v463
        %633 = vmatprep.subr.mxu0 0.0
        %634 = vmatpush1.msra.mxu0 %v465
        %635 = vmatprep.subr.mxu0 0.0
        %636 = vmatpush1.msra.mxu0 %v467
        %637 = vmatprep.subr.mxu0 0.0
        %638 = vmatpush1.msra.mxu0 %v469
        %639 = vmatprep.subr.mxu0 0.0
        %640 = vmatpush1.msra.mxu0 %v471
        %641 = vmatprep.subr.mxu0 0.0
        %642 = vmatpush1.msra.mxu0 %v473
        %643 = vmatprep.subr.mxu0 0.0
        %644 = vmatpush1.msra.mxu0 %v475
        %645 = vmatprep.subr.mxu0 0.0
        %646 = vmatpush1.msra.mxu0 %v477
        %647 = vmatprep.subr.mxu0 0.0
        %648 = vmatpush1.msra.mxu0 %v479
        %649 = vmatprep.subr.mxu0 0.0
        %650 = vmatpush1.msra.mxu0 %v481
        %651 = vmatprep.subr.mxu0 0.0
        %652 = vmatpush1.msra.mxu0 %v483
        %653 = vmatprep.subr.mxu0 0.0
        %654 = vmatpush1.msra.mxu0 %v485
        %655 = vmatprep.subr.mxu0 0.0
        %656 = vmatpush1.msra.mxu0 %v487
        %657 = vmatprep.subr.mxu0 0.0
        %658 = vmatpush1.msra.mxu0 %v489
        %659 = vmatprep.mubr.f32.mxu0 %v499
        %660 = vmatmul.mubr.f32.gmra.mrb[0].mxu0 %v498
        %v661 = vpop.f32.mrb[0].mxu0
        %v662 = vadd.f32 %v533, %v661
        %v663 = vpop.f32.mrb[0].mxu0
        %664 = vmatprep.mubr.f32.mxu0 %v502
        %665 = vmatmul.mubr.f32.gmra.mrb[0].mxu0 %v501
        %v666 = vpop.f32.mrb[0].mxu0
        %v667 = vadd.f32 %v538, %v666
        %v668 = vpop.f32.mrb[0].mxu0
        %669 = vmatprep.mubr.f32.mxu0 %v505
        %670 = vmatmul.mubr.f32.gmra.mrb[0].mxu0 %v504
        %v671 = vpop.f32.mrb[0].mxu0
        %v672 = vadd.f32 %v543, %v671
        %v673 = vpop.f32.mrb[0].mxu0
        %674 = vmatprep.mubr.f32.mxu0 %v508
        %675 = vmatmul.mubr.f32.gmra.mrb[0].mxu0 %v507
        %v676 = vpop.f32.mrb[0].mxu0
        %v677 = vadd.f32 %v548, %v676
        %v678 = vpop.f32.mrb[0].mxu0
        %679 = vmatprep.mubr.f32.mxu0 %v511
        %680 = vmatmul.mubr.f32.gmra.mrb[0].mxu0 %v510
        %v681 = vpop.f32.mrb[0].mxu0
        %v682 = vadd.f32 %v553, %v681
        %v683 = vpop.f32.mrb[0].mxu0
        %684 = vmatprep.mubr.f32.mxu0 %v514
        %685 = vmatmul.mubr.f32.gmra.mrb[0].mxu0 %v513
        %v686 = vpop.f32.mrb[0].mxu0
        %v687 = vadd.f32 %v558, %v686
        %v688 = vpop.f32.mrb[0].mxu0
        %689 = vmatprep.mubr.f32.mxu0 %v517
        %690 = vmatmul.mubr.f32.gmra.mrb[0].mxu0 %v516
        %v691 = vpop.f32.mrb[0].mxu0
        %v692 = vadd.f32 %v563, %v691
        %v693 = vpop.f32.mrb[0].mxu0
        %694 = vmatprep.mubr.f32.mxu0 %v520
        %695 = vmatmul.mubr.f32.gmra.mrb[0].mxu0 %v519
        %v696 = vpop.f32.mrb[0].mxu0
        %v697 = vadd.f32 %v568, %v696
        %v698 = vpop.f32.mrb[0].mxu0
        %699 = vdwg.mxu0
        %700 = vmatprep.subr.mxu0 0.0
        %701 = vmatpush1.msra.mxu0 %v491
        %702 = vmatprep.subr.mxu0 0.0
        %703 = vmatpush1.msra.mxu0 %v493
        %704 = vmatprep.subr.mxu0 0.0
        %705 = vmatpush1.msra.mxu0 %v495
        %706 = vmatprep.subr.mxu0 0.0
        %707 = vmatpush1.msra.mxu0 %v497
        %708 = vmatprep.subr.mxu0 0.0
        %709 = vmatpush1.msra.mxu0 0.0
        %710 = vmatprep.subr.mxu0 0.0
        %711 = vmatpush1.msra.mxu0 0.0
        %712 = vmatprep.subr.mxu0 0.0
        %713 = vmatpush1.msra.mxu0 0.0
        %714 = vmatprep.subr.mxu0 0.0
        %715 = vmatpush1.msra.mxu0 0.0
        %716 = vmatprep.subr.mxu0 0.0
        %717 = vmatpush1.msra.mxu0 0.0
        %718 = vmatprep.subr.mxu0 0.0
        %719 = vmatpush1.msra.mxu0 0.0
        %720 = vmatprep.subr.mxu0 0.0
        %721 = vmatpush1.msra.mxu0 0.0
        %722 = vmatprep.subr.mxu0 0.0
        %723 = vmatpush1.msra.mxu0 0.0
        %724 = vmatprep.subr.mxu0 0.0
        %725 = vmatpush1.msra.mxu0 0.0
        %726 = vmatprep.subr.mxu0 0.0
        %727 = vmatpush1.msra.mxu0 0.0
        %728 = vmatprep.subr.mxu0 0.0
        %729 = vmatpush1.msra.mxu0 0.0
        %730 = vmatprep.subr.mxu0 0.0
        %731 = vmatpush1.msra.mxu0 0.0
        %732 = vmatprep.subr.mxu0 0.0
        %733 = vmatpush1.msra.mxu0 0.0
        %734 = vmatprep.subr.mxu0 0.0
        %735 = vmatpush1.msra.mxu0 0.0
        %736 = vmatprep.subr.mxu0 0.0
        %737 = vmatpush1.msra.mxu0 0.0
        %738 = vmatprep.subr.mxu0 0.0
        %739 = vmatpush1.msra.mxu0 0.0
        %740 = vmatprep.subr.mxu0 0.0
        %741 = vmatpush1.msra.mxu0 0.0
        %742 = vmatprep.subr.mxu0 0.0
        %743 = vmatpush1.msra.mxu0 0.0
        %744 = vmatprep.subr.mxu0 0.0
        %745 = vmatpush1.msra.mxu0 0.0
        %746 = vmatprep.subr.mxu0 0.0
        %747 = vmatpush1.msra.mxu0 0.0
        %748 = vmatprep.subr.mxu0 0.0
        %749 = vmatpush1.msra.mxu0 0.0
        %750 = vmatprep.subr.mxu0 0.0
        %751 = vmatpush1.msra.mxu0 0.0
        %752 = vmatprep.subr.mxu0 0.0
        %753 = vmatpush1.msra.mxu0 0.0
        %754 = vmatprep.subr.mxu0 0.0
        %755 = vmatpush1.msra.mxu0 0.0
        %756 = vmatprep.subr.mxu0 0.0
        %757 = vmatpush1.msra.mxu0 0.0
        %758 = vmatprep.subr.mxu0 0.0
        %759 = vmatpush1.msra.mxu0 0.0
        %760 = vmatprep.subr.mxu0 0.0
        %761 = vmatpush1.msra.mxu0 0.0
        %762 = vmatprep.subr.mxu0 0.0
        %763 = vmatpush1.msra.mxu0 0.0
        %764 = vmatprep.mubr.f32.mxu0 0.0
        %765 = vmatmul.mubr.f32.gmra.mrb[0].mxu0 %v572
        %v766 = vpop.f32.mrb[0].mxu0
        %v767 = vadd.f32 %v662, %v766
        %v768 = vpop.f32.mrb[0].mxu0
        %769 = vmatprep.mubr.f32.mxu0 0.0
        %770 = vmatmul.mubr.f32.gmra.mrb[0].mxu0 %v575
        %v771 = vpop.f32.mrb[0].mxu0
        %v772 = vadd.f32 %v667, %v771
        %v773 = vpop.f32.mrb[0].mxu0
        %774 = vmatprep.mubr.f32.mxu0 0.0
        %775 = vmatmul.mubr.f32.gmra.mrb[0].mxu0 %v578
        %v776 = vpop.f32.mrb[0].mxu0
        %v777 = vadd.f32 %v672, %v776
        %v778 = vpop.f32.mrb[0].mxu0
        %779 = vmatprep.mubr.f32.mxu0 0.0
        %780 = vmatmul.mubr.f32.gmra.mrb[0].mxu0 %v581
        %v781 = vpop.f32.mrb[0].mxu0
        %v782 = vadd.f32 %v677, %v781
        %v783 = vpop.f32.mrb[0].mxu0
        %784 = vmatprep.mubr.f32.mxu0 0.0
        %785 = vmatmul.mubr.f32.gmra.mrb[0].mxu0 %v584
        %v786 = vpop.f32.mrb[0].mxu0
        %v787 = vadd.f32 %v682, %v786
        %v788 = vpop.f32.mrb[0].mxu0
        %789 = vmatprep.mubr.f32.mxu0 0.0
        %790 = vmatmul.mubr.f32.gmra.mrb[0].mxu0 %v587
        %v791 = vpop.f32.mrb[0].mxu0
        %v792 = vadd.f32 %v687, %v791
        %v793 = vpop.f32.mrb[0].mxu0
        %794 = vmatprep.mubr.f32.mxu0 0.0
        %795 = vmatmul.mubr.f32.gmra.mrb[0].mxu0 %v590
        %v796 = vpop.f32.mrb[0].mxu0
        %v797 = vadd.f32 %v692, %v796
        %v798 = vpop.f32.mrb[0].mxu0
        %799 = vmatprep.mubr.f32.mxu0 0.0
        %800 = vmatmul.mubr.f32.gmra.mrb[0].mxu0 %v593
        %v801 = vpop.f32.mrb[0].mxu0
        %v802 = vadd.f32 %v697, %v801
        %v803 = vpop.f32.mrb[0].mxu0
        %804 = vdwg.mxu0
        %v805 = vmax.f32 %v767, 0.0
        %v806 = vmax.f32 %v772, 0.0
        %v807 = vmax.f32 %v777, 0.0
        %v808 = vmax.f32 %v782, 0.0
        %v809 = vmax.f32 %v787, 0.0
        %v810 = vmax.f32 %v792, 0.0
        %v811 = vmax.f32 %v797, 0.0
        %v812 = vmax.f32 %v802, 0.0
        %v813 = vadd.f32 %v805, %v806
        %v814 = vadd.f32 %v813, %v807
        %v815 = vadd.f32 %v814, %v808
        %v816 = vadd.f32 %v815, %v809
        %v817 = vadd.f32 %v816, %v810
        %v818 = vadd.f32 %v817, %v811
        %v819 = vadd.f32 %v818, %v812
        %v820 = vrot.slane %v819, 4
        %v821 = vadd.f32 %v819, %v820
        %v822 = vrot.slane %v821, 2
        %v823 = vadd.f32 %v821, %v822
        %v824 = vrot.slane %v823, 1
        %v825 = vadd.f32 %v823, %v824
        %v826 = vmul.f32 %v825, 0.015625
        %v827 = vmax.f32 %v805, %v809
        %v828 = vmax.f32 %v806, %v810
        %v829 = vmax.f32 %v807, %v811
        %v830 = vmax.f32 %v808, %v812
        %v831 = vmax.f32 %v827, %v828
        %v832 = vmax.f32 %v829, %v830
        %v833 = vmax.f32 %v831, %v832
        %v834 = vrot.slane %v833, 4
        %v835 = vmax.f32 %v833, %v834
        %v836 = vrot.slane %v835, 2
        %v837 = vmax.f32 %v835, %v836
        %v838 = vrot.slane %v837, 1
        %v839 = vmax.f32 %v837, %v838
        %vm840 = vcmask 1040384
        %v841 = vsel %vm840, %v826, %v839
        %v842 = vld [vmem:[%s6] sm:$0x1]
        %v844 = vlaneseq
        %v845 = vshrl.u32 %v844, 7
        %v846 = vsub.s32 0, %v845
        %v847 = vrot.slane %v842, %v846
        %v849 = vmul.f32 %v841, %v847
        %850 = vrot.lane.b32.xlu0 %v849, 24
        %v851 = vpop.permute.xlu0 %850
        %v852 = vld [vmem:[%s5] sm:$0x3]
        %v853 = vmul.f32 %v852, %v851
        %854 = vrot.lane.b32.xlu0 %v849, 17
        %v855 = vpop.permute.xlu0 %854
        %s856 = scalar_lea.vmem %s5, 14
        %v857 = vld [vmem:[%s856] sm:$0x3]
        %v858 = vmul.f32 %v857, %v855
        %v859 = vadd.f32 %v853, %v858
        %860 = vrot.lane.b32.xlu0 %v849, 10
        %v861 = vpop.permute.xlu0 %860
        %s862 = scalar_lea.vmem %s5, 28
        %v863 = vld [vmem:[%s862] sm:$0x3]
        %v864 = vmul.f32 %v863, %v861
        %v865 = vadd.f32 %v859, %v864
        %866 = vrot.lane.b32.xlu0 %v849, 3
        %v867 = vpop.permute.xlu0 %866
        %s868 = scalar_lea.vmem %s5, 42
        %v869 = vld [vmem:[%s868] sm:$0x3]
        %v870 = vmul.f32 %v869, %v867
        %v871 = vadd.f32 %v865, %v870
        %872 = vrot.lane.b32.xlu0 %v849, 124
        %v873 = vpop.permute.xlu0 %872
        %s874 = scalar_lea.vmem %s5, 56
        %v875 = vld [vmem:[%s874] sm:$0x3]
        %v876 = vmul.f32 %v875, %v873
        %v877 = vadd.f32 %v871, %v876
        %878 = vrot.lane.b32.xlu0 %v849, 117
        %v879 = vpop.permute.xlu0 %878
        %s880 = scalar_lea.vmem %s5, 70
        %v881 = vld [vmem:[%s880] sm:$0x3]
        %v882 = vmul.f32 %v881, %v879
        %v883 = vadd.f32 %v877, %v882
        %884 = vrot.lane.b32.xlu0 %v849, 110
        %v885 = vpop.permute.xlu0 %884
        %s886 = scalar_lea.vmem %s5, 84
        %v887 = vld [vmem:[%s886] sm:$0x3]
        %v888 = vmul.f32 %v887, %v885
        %v889 = vadd.f32 %v883, %v888
        %890 = vrot.lane.b32.xlu0 %v849, 23
        %v891 = vpop.permute.xlu0 %890
        %s892 = scalar_lea.vmem %s5, 2
        %v893 = vld [vmem:[%s892] sm:$0x3]
        %v894 = vmul.f32 %v893, %v891
        %895 = vrot.lane.b32.xlu0 %v849, 16
        %v896 = vpop.permute.xlu0 %895
        %s897 = scalar_lea.vmem %s5, 16
        %v898 = vld [vmem:[%s897] sm:$0x3]
        %v899 = vmul.f32 %v898, %v896
        %v900 = vadd.f32 %v894, %v899
        %901 = vrot.lane.b32.xlu0 %v849, 9
        %v902 = vpop.permute.xlu0 %901
        %s903 = scalar_lea.vmem %s5, 30
        %v904 = vld [vmem:[%s903] sm:$0x3]
        %v905 = vmul.f32 %v904, %v902
        %v906 = vadd.f32 %v900, %v905
        %907 = vrot.lane.b32.xlu0 %v849, 2
        %v908 = vpop.permute.xlu0 %907
        %s909 = scalar_lea.vmem %s5, 44
        %v910 = vld [vmem:[%s909] sm:$0x3]
        %v911 = vmul.f32 %v910, %v908
        %v912 = vadd.f32 %v906, %v911
        %913 = vrot.lane.b32.xlu0 %v849, 123
        %v914 = vpop.permute.xlu0 %913
        %s915 = scalar_lea.vmem %s5, 58
        %v916 = vld [vmem:[%s915] sm:$0x3]
        %v917 = vmul.f32 %v916, %v914
        %v918 = vadd.f32 %v912, %v917
        %919 = vrot.lane.b32.xlu0 %v849, 116
        %v920 = vpop.permute.xlu0 %919
        %s921 = scalar_lea.vmem %s5, 72
        %v922 = vld [vmem:[%s921] sm:$0x3]
        %v923 = vmul.f32 %v922, %v920
        %v924 = vadd.f32 %v918, %v923
        %925 = vrot.lane.b32.xlu0 %v849, 109
        %v926 = vpop.permute.xlu0 %925
        %s927 = scalar_lea.vmem %s5, 86
        %v928 = vld [vmem:[%s927] sm:$0x3]
        %v929 = vmul.f32 %v928, %v926
        %v930 = vadd.f32 %v924, %v929
        %931 = vrot.lane.b32.xlu0 %v849, 22
        %v932 = vpop.permute.xlu0 %931
        %s933 = scalar_lea.vmem %s5, 4
        %v934 = vld [vmem:[%s933] sm:$0x3]
        %v935 = vmul.f32 %v934, %v932
        %936 = vrot.lane.b32.xlu0 %v849, 15
        %v937 = vpop.permute.xlu0 %936
        %s938 = scalar_lea.vmem %s5, 18
        %v939 = vld [vmem:[%s938] sm:$0x3]
        %v940 = vmul.f32 %v939, %v937
        %v941 = vadd.f32 %v935, %v940
        %942 = vrot.lane.b32.xlu0 %v849, 8
        %v943 = vpop.permute.xlu0 %942
        %s944 = scalar_lea.vmem %s5, 32
        %v945 = vld [vmem:[%s944] sm:$0x3]
        %v946 = vmul.f32 %v945, %v943
        %v947 = vadd.f32 %v941, %v946
        %948 = vrot.lane.b32.xlu0 %v849, 1
        %v949 = vpop.permute.xlu0 %948
        %s950 = scalar_lea.vmem %s5, 46
        %v951 = vld [vmem:[%s950] sm:$0x3]
        %v952 = vmul.f32 %v951, %v949
        %v953 = vadd.f32 %v947, %v952
        %954 = vrot.lane.b32.xlu0 %v849, 122
        %v955 = vpop.permute.xlu0 %954
        %s956 = scalar_lea.vmem %s5, 60
        %v957 = vld [vmem:[%s956] sm:$0x3]
        %v958 = vmul.f32 %v957, %v955
        %v959 = vadd.f32 %v953, %v958
        %960 = vrot.lane.b32.xlu0 %v849, 115
        %v961 = vpop.permute.xlu0 %960
        %s962 = scalar_lea.vmem %s5, 74
        %v963 = vld [vmem:[%s962] sm:$0x3]
        %v964 = vmul.f32 %v963, %v961
        %v965 = vadd.f32 %v959, %v964
        %966 = vrot.lane.b32.xlu0 %v849, 108
        %v967 = vpop.permute.xlu0 %966
        %s968 = scalar_lea.vmem %s5, 88
        %v969 = vld [vmem:[%s968] sm:$0x3]
        %v970 = vmul.f32 %v969, %v967
        %v971 = vadd.f32 %v965, %v970
        %972 = vrot.lane.b32.xlu0 %v849, 21
        %v973 = vpop.permute.xlu0 %972
        %s974 = scalar_lea.vmem %s5, 6
        %v975 = vld [vmem:[%s974] sm:$0x3]
        %v976 = vmul.f32 %v975, %v973
        %977 = vrot.lane.b32.xlu0 %v849, 14
        %v978 = vpop.permute.xlu0 %977
        %s979 = scalar_lea.vmem %s5, 20
        %v980 = vld [vmem:[%s979] sm:$0x3]
        %v981 = vmul.f32 %v980, %v978
        %v982 = vadd.f32 %v976, %v981
        %983 = vrot.lane.b32.xlu0 %v849, 7
        %v984 = vpop.permute.xlu0 %983
        %s985 = scalar_lea.vmem %s5, 34
        %v986 = vld [vmem:[%s985] sm:$0x3]
        %v987 = vmul.f32 %v986, %v984
        %v988 = vadd.f32 %v982, %v987
        %s989 = scalar_lea.vmem %s5, 48
        %v990 = vld [vmem:[%s989] sm:$0x3]
        %v991 = vmul.f32 %v990, %v849
        %v992 = vadd.f32 %v988, %v991
        %993 = vrot.lane.b32.xlu0 %v849, 121
        %v994 = vpop.permute.xlu0 %993
        %s995 = scalar_lea.vmem %s5, 62
        %v996 = vld [vmem:[%s995] sm:$0x3]
        %v997 = vmul.f32 %v996, %v994
        %v998 = vadd.f32 %v992, %v997
        %999 = vrot.lane.b32.xlu0 %v849, 114
        %v1000 = vpop.permute.xlu0 %999
        %s1001 = scalar_lea.vmem %s5, 76
        %v1002 = vld [vmem:[%s1001] sm:$0x3]
        %v1003 = vmul.f32 %v1002, %v1000
        %v1004 = vadd.f32 %v998, %v1003
        %1005 = vrot.lane.b32.xlu0 %v849, 107
        %v1006 = vpop.permute.xlu0 %1005
        %s1007 = scalar_lea.vmem %s5, 90
        %v1008 = vld [vmem:[%s1007] sm:$0x3]
        %v1009 = vmul.f32 %v1008, %v1006
        %v1010 = vadd.f32 %v1004, %v1009
        %1011 = vrot.lane.b32.xlu0 %v849, 20
        %v1012 = vpop.permute.xlu0 %1011
        %s1013 = scalar_lea.vmem %s5, 8
        %v1014 = vld [vmem:[%s1013] sm:$0x3]
        %v1015 = vmul.f32 %v1014, %v1012
        %1016 = vrot.lane.b32.xlu0 %v849, 13
        %v1017 = vpop.permute.xlu0 %1016
        %s1018 = scalar_lea.vmem %s5, 22
        %v1019 = vld [vmem:[%s1018] sm:$0x3]
        %v1020 = vmul.f32 %v1019, %v1017
        %v1021 = vadd.f32 %v1015, %v1020
        %1022 = vrot.lane.b32.xlu0 %v849, 6
        %v1023 = vpop.permute.xlu0 %1022
        %s1024 = scalar_lea.vmem %s5, 36
        %v1025 = vld [vmem:[%s1024] sm:$0x3]
        %v1026 = vmul.f32 %v1025, %v1023
        %v1027 = vadd.f32 %v1021, %v1026
        %1028 = vrot.lane.b32.xlu0 %v849, 127
        %v1029 = vpop.permute.xlu0 %1028
        %s1030 = scalar_lea.vmem %s5, 50
        %v1031 = vld [vmem:[%s1030] sm:$0x3]
        %v1032 = vmul.f32 %v1031, %v1029
        %v1033 = vadd.f32 %v1027, %v1032
        %1034 = vrot.lane.b32.xlu0 %v849, 120
        %v1035 = vpop.permute.xlu0 %1034
        %s1036 = scalar_lea.vmem %s5, 64
        %v1037 = vld [vmem:[%s1036] sm:$0x3]
        %v1038 = vmul.f32 %v1037, %v1035
        %v1039 = vadd.f32 %v1033, %v1038
        %1040 = vrot.lane.b32.xlu0 %v849, 113
        %v1041 = vpop.permute.xlu0 %1040
        %s1042 = scalar_lea.vmem %s5, 78
        %v1043 = vld [vmem:[%s1042] sm:$0x3]
        %v1044 = vmul.f32 %v1043, %v1041
        %v1045 = vadd.f32 %v1039, %v1044
        %1046 = vrot.lane.b32.xlu0 %v849, 106
        %v1047 = vpop.permute.xlu0 %1046
        %s1048 = scalar_lea.vmem %s5, 92
        %v1049 = vld [vmem:[%s1048] sm:$0x3]
        %v1050 = vmul.f32 %v1049, %v1047
        %v1051 = vadd.f32 %v1045, %v1050
        %1052 = vrot.lane.b32.xlu0 %v849, 19
        %v1053 = vpop.permute.xlu0 %1052
        %s1054 = scalar_lea.vmem %s5, 10
        %v1055 = vld [vmem:[%s1054] sm:$0x3]
        %v1056 = vmul.f32 %v1055, %v1053
        %1057 = vrot.lane.b32.xlu0 %v849, 12
        %v1058 = vpop.permute.xlu0 %1057
        %s1059 = scalar_lea.vmem %s5, 24
        %v1060 = vld [vmem:[%s1059] sm:$0x3]
        %v1061 = vmul.f32 %v1060, %v1058
        %v1062 = vadd.f32 %v1056, %v1061
        %1063 = vrot.lane.b32.xlu0 %v849, 5
        %v1064 = vpop.permute.xlu0 %1063
        %s1065 = scalar_lea.vmem %s5, 38
        %v1066 = vld [vmem:[%s1065] sm:$0x3]
        %v1067 = vmul.f32 %v1066, %v1064
        %v1068 = vadd.f32 %v1062, %v1067
        %1069 = vrot.lane.b32.xlu0 %v849, 126
        %v1070 = vpop.permute.xlu0 %1069
        %s1071 = scalar_lea.vmem %s5, 52
        %v1072 = vld [vmem:[%s1071] sm:$0x3]
        %v1073 = vmul.f32 %v1072, %v1070
        %v1074 = vadd.f32 %v1068, %v1073
        %1075 = vrot.lane.b32.xlu0 %v849, 119
        %v1076 = vpop.permute.xlu0 %1075
        %s1077 = scalar_lea.vmem %s5, 66
        %v1078 = vld [vmem:[%s1077] sm:$0x3]
        %v1079 = vmul.f32 %v1078, %v1076
        %v1080 = vadd.f32 %v1074, %v1079
        %1081 = vrot.lane.b32.xlu0 %v849, 112
        %v1082 = vpop.permute.xlu0 %1081
        %s1083 = scalar_lea.vmem %s5, 80
        %v1084 = vld [vmem:[%s1083] sm:$0x3]
        %v1085 = vmul.f32 %v1084, %v1082
        %v1086 = vadd.f32 %v1080, %v1085
        %1087 = vrot.lane.b32.xlu0 %v849, 105
        %v1088 = vpop.permute.xlu0 %1087
        %s1089 = scalar_lea.vmem %s5, 94
        %v1090 = vld [vmem:[%s1089] sm:$0x3]
        %v1091 = vmul.f32 %v1090, %v1088
        %v1092 = vadd.f32 %v1086, %v1091
        %1093 = vrot.lane.b32.xlu0 %v849, 18
        %v1094 = vpop.permute.xlu0 %1093
        %s1095 = scalar_lea.vmem %s5, 12
        %v1096 = vld [vmem:[%s1095] sm:$0x3]
        %v1097 = vmul.f32 %v1096, %v1094
        %1098 = vrot.lane.b32.xlu0 %v849, 11
        %v1099 = vpop.permute.xlu0 %1098
        %s1100 = scalar_lea.vmem %s5, 26
        %v1101 = vld [vmem:[%s1100] sm:$0x3]
        %v1102 = vmul.f32 %v1101, %v1099
        %v1103 = vadd.f32 %v1097, %v1102
        %1104 = vrot.lane.b32.xlu0 %v849, 4
        %v1105 = vpop.permute.xlu0 %1104
        %s1106 = scalar_lea.vmem %s5, 40
        %v1107 = vld [vmem:[%s1106] sm:$0x3]
        %v1108 = vmul.f32 %v1107, %v1105
        %v1109 = vadd.f32 %v1103, %v1108
        %1110 = vrot.lane.b32.xlu0 %v849, 125
        %v1111 = vpop.permute.xlu0 %1110
        %s1112 = scalar_lea.vmem %s5, 54
        %v1113 = vld [vmem:[%s1112] sm:$0x3]
        %v1114 = vmul.f32 %v1113, %v1111
        %v1115 = vadd.f32 %v1109, %v1114
        %1116 = vrot.lane.b32.xlu0 %v849, 118
        %v1117 = vpop.permute.xlu0 %1116
        %s1118 = scalar_lea.vmem %s5, 68
        %v1119 = vld [vmem:[%s1118] sm:$0x3]
        %v1120 = vmul.f32 %v1119, %v1117
        %v1121 = vadd.f32 %v1115, %v1120
        %1122 = vrot.lane.b32.xlu0 %v849, 111
        %v1123 = vpop.permute.xlu0 %1122
        %s1124 = scalar_lea.vmem %s5, 82
        %v1125 = vld [vmem:[%s1124] sm:$0x3]
        %v1126 = vmul.f32 %v1125, %v1123
        %v1127 = vadd.f32 %v1121, %v1126
        %1128 = vrot.lane.b32.xlu0 %v849, 104
        %v1129 = vpop.permute.xlu0 %1128
        %s1130 = scalar_lea.vmem %s5, 96
        %v1131 = vld [vmem:[%s1130] sm:$0x3]
        %v1132 = vmul.f32 %v1131, %v1129
        %v1133 = vadd.f32 %v1127, %v1132
        %v1134 = vadd.f32 %v889, %v930
        %v1135 = vadd.f32 %v971, %v1010
        %v1136 = vadd.f32 %v1051, %v1092
        %v1137 = vadd.f32 %v1134, %v1135
        %v1138 = vadd.f32 %v1136, %v1133
        %v1139 = vadd.f32 %v1137, %v1138
        %v1141 = vrot.slane %v1139, 1
        %v1143 = vadd.f32 %v1139, %v1141
        %v1144 = vxor.u32 %v1143, 2147483648
        %v1145 = vmul.f32 %v1144, 1.442695
        %v1146 = vpow.pop %v1145
        %v1147 = vadd.f32 %v1146, 1.0
        %v1148 = vrcp.pop %v1147
        %v1149 = vmul.f32 1.0, %v1148
        %1150 = vst [vmem:[%s310] sm:$0x1] %v1149
        %s1151 = sand.u32 %s185, 1
        %s1152 = scalar_lea.sflag [#allocation4], %s1151
        %s1153 = sand.u32 %s185, 1
        %s1154 = scalar_lea.vmem [#allocation7], %s1153
        // Predicated region
        $region57: #{tpu_custom_call.1} parent=47 // pred_check
          %p1155 = pneg %p195
        $region58: #{tpu_custom_call.1} parent=47 // pred_check_branch
          %1157 = sbr.rel (%p1155) target = $region60
        $region59: #{tpu_custom_call.1} parent=47 // pred_region
          %s1159 = ssub.s32 16, 16
          %1160 = vsyncadd %s1152, %s1159
          %s1161 = smul.addr %s25, 16
          %s1162 = scalar_lea.hbm %s7, %s1161
          %s1164 = sshll.u32 %s1154, 4
          %s1165 = int_to_ptr.vmem [resolvable:$true] %s1164
          %1167 = dma.vmem_to_hbm [thread:$0]  %s1165, 16, %s1162, %s1152
        $region60: #{tpu_custom_call.1} parent=47 // pred_fallthru
          _
      $region48: #{tpu_custom_call.1} parent=5 // pred_fallthru
        _
      %p1168 = scmp.le.s32.totalorder 2, %s20
      // Predicated region
      $region61: #{tpu_custom_call.1} parent=5 // pred_check
        %p1169 = pneg %p1168
      $region62: #{tpu_custom_call.1} parent=5 // pred_check_branch
        %1171 = sbr.rel (%p1169) target = $region64
      $region63: #{tpu_custom_call.1} parent=5 // pred_region
        %s1172 = ssub.s32 %s20, 2
        // Predicated region
        $region65: #{tpu_custom_call.1} parent=63 // pred_check
          %p1173 = pneg %p201
        $region66: #{tpu_custom_call.1} parent=63 // pred_check_branch
          %1175 = sbr.rel (%p1173) target = $region68
        $region67: #{tpu_custom_call.1} parent=63 // pred_region
          %s1176 = sand.u32 %s186, 1
          %s1177 = scalar_lea.sflag [#allocation4], %s1176
          %s1178 = sand.u32 %s186, 1
          %s1179 = scalar_lea.vmem [#allocation7], %s1178
          %1180 = dma.done %s1177, 16
        $region68: #{tpu_custom_call.1} parent=63 // pred_fallthru
          _
      $region64: #{tpu_custom_call.1} parent=5 // pred_fallthru
        _
    $region6: #{tpu_custom_call.1} parent=1 // loop_footer
      %s24 = sadd.s32 1, %s20
    $region7: #{tpu_custom_call.1} parent=1 // loop_footer_branch
      %19 = sbr.rel target = $region3
    $region8: #{tpu_custom_call.1} parent=1 // loop_exit
      _
    %1181 = vsyncpa [#allocation3], 1
    %s1182 = scalar_lea.sflag [#allocation3], 1
    %1183 = vsyncpa %s1182, 1
    %1184 = vsyncpa [#allocation6], 1
    %1185 = vsyncpa [#allocation4], 1
    %s1186 = scalar_lea.sflag [#allocation4], 1
    %1187 = vsyncpa %s1186, 1

</llo_original>
